<compile_context>
chip_gen: v7x
topology: tpu7x:2x2x1
jax: 0.10.0
libtpu: 0.0.40
codegen_flags: <defaults>
</compile_context>

<pallas_src>
import functools

import jax
import jax.numpy as jnp
import numpy as np
from jax.experimental import pallas as pl
from jax.experimental.pallas import tpu as pltpu


def _round_up(x, m):
    return ((x + m - 1) // m) * m


def _conv_row_kernel(x_ref, w_ref, b_ref, o_ref, *, row_tile, stride, kh_sz):
    """One (batch, output-row-tile) grid step.

    x_ref: (1, hp_pad, k_pad)        H-upsampled / H-reflection-padded image,
                                     width+channels flattened to a zero-padded lane axis
    w_ref: (kh_sz, k_pad, wcols_pad) width-folded Toeplitz weight
    b_ref: (1, wcols_pad)            bias tiled across output width (f32)
    o_ref: (1, row_tile, wcols_pad)  lane-dense output tile
    """
    t = pl.program_id(1)
    row0 = pl.multiple_of(t * (row_tile * stride), 8)   # row_tile % 8 == 0 (asserted)

    wcols = o_ref.shape[-1]
    acc = jnp.zeros((row_tile, wcols), dtype=jnp.float32)
    for kh in range(kh_sz):                              # static unroll over KH
        if stride == 1:
            rows = x_ref[0, pl.ds(row0 + kh, row_tile), :]          # (row_tile, k_pad)
        else:
            # TODO(synk): for stride > 1 pre-interleave rows wrapper-side so this
            # becomes a contiguous 8-row-aligned load instead of a strided slice.
            win = x_ref[0, pl.ds(row0 + kh, (row_tile - 1) * stride + 1), :]
            rows = win[::stride, :]
        acc = acc + jnp.dot(rows, w_ref[kh], preferred_element_type=jnp.float32)
    acc = acc + b_ref[...].astype(jnp.float32)
    o_ref[0] = acc.astype(o_ref.dtype)                   # unmasked lane-dense store


def _build_width_folded_weight(weight, *, w_in, w_out, stride, upsample, pad,
                               k_pad, wcols_pad, compute_dtype):
    """Fold KW taps, stride, channels AND the width-side nearest upsample +
    reflection pad of an HWIO conv weight into (KH, W_in*Cin pad, W_out*Cout pad):

        w_big[kh, wsrc(c*stride+kw)*Cin + ci, c*Cout + co] += weight[kh, kw, ci, co]

    where wsrc() maps a padded-upsampled width position back to the original
    (pre-upsample, pre-pad) column via reflection + floor-division.
    """
    kh_sz, kw_sz, cin, cout = weight.shape
    u = upsample or 1
    w_up = w_in * u
    assert pad < w_up, "reflection pad must be smaller than the upsampled width"

    c = jnp.arange(w_out)
    ci = jnp.arange(cin)
    co = jnp.arange(cout)
    cols = c[:, None, None] * cout + co[None, None, :]              # (w_out, 1, cout)

    rows_per_kw = []
    for kw in range(kw_sz):
        b = c * stride + kw                          # padded-upsampled width position
        t = b - pad
        t = jnp.where(t < 0, -t, t)                  # ReflectionPad2d, left edge
        t = jnp.where(t >= w_up, 2 * w_up - 2 - t, t)  # right edge
        src = t // u                                 # original width column
        rows_per_kw.append(src[:, None, None] * cin + ci[None, :, None])  # (w_out,cin,1)

    planes = []
    for kh in range(kh_sz):
        plane = jnp.zeros((k_pad, wcols_pad), dtype=jnp.float32)
        for kw in range(kw_sz):
            vals = jnp.broadcast_to(
                weight[kh, kw].astype(jnp.float32)[None], (w_out, cin, cout))
            plane = plane.at[rows_per_kw[kw], cols].add(vals)
        planes.append(plane)
    return jnp.stack(planes).astype(compute_dtype)


def make_upsample_conv_layer(weight, bias, *, kernel_size, stride, upsample=None,
                             in_hw, row_tile=None, compute_dtype=jnp.bfloat16,
                             out_dtype=jnp.float32):
    """Build UpsampleConvLayer.forward for a fixed input (H, W).

    The Toeplitz weight and tiled bias are precomputed here (hoisted out of
    the per-call path).  Returned callable: (N, Cin, H, W) -> (N, Cout, H_out, W_out).
    """
    kh_sz, kw_sz, cin, cout = weight.shape
    assert kh_sz == kernel_size and kw_sz == kernel_size
    h_in, w_in = in_hw
    u = upsample or 1
    pad = kernel_size // 2

    hp = h_in * u + 2 * pad
    h_out = (hp - kernel_size) // stride + 1
    w_up = w_in * u
    w_out = (w_up + 2 * pad - kernel_size) // stride + 1

    k_lanes = w_in * cin
    k_pad = max(128, _round_up(k_lanes, 128))            # contraction lanes (aligned)
    wcols = w_out * cout
    wcols_pad = max(128, _round_up(wcols, 128))          # lane-dense unmasked stores

    if row_tile is None:
        row_tile = min(32, _round_up(h_out, 8))          # M=32: fills the MXU pipe
    assert row_tile % 8 == 0, "row_tile must be a multiple of 8 (sublane tiling)"

    h_out_pad = _round_up(h_out, row_tile)
    hp_pad = _round_up(max(hp, (h_out_pad - 1) * stride + kernel_size), 8)
    n_row_tiles = h_out_pad // row_tile

    # ---- precomputed (once per layer, not per call) ----
    w_big = _build_width_folded_weight(
        weight, w_in=w_in, w_out=w_out, stride=stride, upsample=upsample, pad=pad,
        k_pad=k_pad, wcols_pad=wcols_pad, compute_dtype=compute_dtype)
    bias_row = jnp.pad(jnp.tile(bias.astype(jnp.float32), w_out),
                       (0, wcols_pad - wcols)).reshape(1, wcols_pad)

    kernel = functools.partial(_conv_row_kernel, row_tile=row_tile,
                               stride=stride, kh_sz=kernel_size)
    out_isize = np.dtype(out_dtype).itemsize

    def _run(x_rows, n, use_buffered):
        const_kw = dict(pipeline_mode=pl.Buffered(1)) if use_buffered else {}
        cost = pl.CostEstimate(
            flops=int(2 * n * n_row_tiles * kernel_size * row_tile * k_pad * wcols_pad),
            transcendentals=0,
            bytes_accessed=int(x_rows.size * x_rows.dtype.itemsize
                               + w_big.size * w_big.dtype.itemsize
                               + bias_row.size * 4
                               + n * h_out_pad * wcols_pad * out_isize))
        return pl.pallas_call(
            kernel,
            out_shape=jax.ShapeDtypeStruct((n, h_out_pad, wcols_pad), out_dtype),
            grid_spec=pltpu.PrefetchScalarGridSpec(
                num_scalar_prefetch=0,
                grid=(n, n_row_tiles),
                in_specs=[
                    # Whole padded image per batch; block index constant in t so it
                    # is DMA'd once per batch and stays VMEM-resident.
                    # TODO(synk): at production image heights, H-tile with halo rows
                    # (pl.Element / manual DMA) so the resident window is
                    # rows_needed*k_pad and fits v7x's 64 MiB VMEM.
                    pl.BlockSpec((1, hp_pad, k_pad), lambda b, t: (b, 0, 0)),
                    # Constant-index blocks: single pipeline buffer when supported.
                    pl.BlockSpec((kernel_size, k_pad, wcols_pad),
                                 lambda b, t: (0, 0, 0), **const_kw),
                    pl.BlockSpec((1, wcols_pad), lambda b, t: (0, 0), **const_kw),
                ],
                out_specs=pl.BlockSpec((1, row_tile, wcols_pad),
                                       lambda b, t: (b, t, 0)),
            ),
            compiler_params=pltpu.CompilerParams(
                dimension_semantics=("parallel", "parallel"),
                # Explicit VMEM budget (toy shapes need <1 MiB); re-derive per
                # generation (64 MiB physical on v7x) once H-tiling lands.
                vmem_limit_bytes=32 * 1024 * 1024),
            cost_estimate=cost,
        )(x_rows, w_big, bias_row)

    state = {"buffered_ok": None}   # cache whether pl.Buffered(1) lowers cleanly

    def apply(x_nchw):
        n, cin_, h, w = x_nchw.shape
        assert cin_ == cin and (h, w) == (h_in, w_in), "layer built for fixed (Cin, H, W)"

        # ---- wrapper glue (plain JAX): H upsample + H reflection pad only ----
        # Width-side upsample / reflection / lane padding live in the Toeplitz
        # weight, so the only HBM-materialised inflation is u-x along H.
        # TODO(synk): fuse the H nearest-upsample + H reflection pad into the
        # kernel (row-index table in SMEM + in-VMEM sublane replication) to drop
        # the remaining u-x inflated intermediate.
        x = x_nchw
        if u > 1:
            x = jnp.repeat(x, u, axis=2)                              # nearest, H only
        if pad > 0:
            x = jnp.pad(x, ((0, 0), (0, 0), (pad, pad), (0, 0)), mode="reflect")
        # (N, Cin, Hp, W) -> (N, Hp, W*Cin): width+channels flattened to lanes.
        # TODO(synk): accept/return NHWC to drop this NCHW<->NHWC transpose pair.
        x = jnp.transpose(x, (0, 2, 3, 1)).reshape(n, hp, k_lanes)
        # One constant pad: lane pad to a 128-multiple + row pad for tiling.
        x = jnp.pad(x, ((0, 0), (0, hp_pad - hp), (0, k_pad - k_lanes)))
        x = x.astype(compute_dtype)

        if state["buffered_ok"] is None:
            try:
                out = _run(x, n, use_buffered=True)
                state["buffered_ok"] = True
            except Exception:
                # pipeline_mode=pl.Buffered not supported here -> default buffering.
                out = _run(x, n, use_buffered=False)
                state["buffered_ok"] = False
        else:
            out = _run(x, n, use_buffered=state["buffered_ok"])

        out = out[:, :h_out, :wcols].reshape(n, h_out, w_out, cout)
        return jnp.transpose(out, (0, 3, 1, 2))                       # back to NCHW

    return apply


def _reference(x_nchw, weight, bias, *, kernel_size, stride, upsample):
    """Pure-JAX reference mirroring the PyTorch module."""
    x = x_nchw
    if upsample:
        x = jnp.repeat(jnp.repeat(x, upsample, axis=2), upsample, axis=3)
    pad = kernel_size // 2
    x = jnp.pad(x, ((0, 0), (0, 0), (pad, pad), (pad, pad)), mode="reflect")
    w_oihw = jnp.transpose(weight, (3, 2, 0, 1))
    out = jax.lax.conv_general_dilated(
        x, w_oihw, window_strides=(stride, stride), padding="VALID",
        dimension_numbers=("NCHW", "OIHW", "NCHW"))
    return out + bias.reshape(1, -1, 1, 1)


if __name__ == "__main__":
    key = jax.random.PRNGKey(0)
    k_x, k_w, k_b = jax.random.split(key, 3)

    in_channels, out_channels = 4, 8
    kernel_size, stride, upsample = 3, 1, 2
    batch, height, width = 2, 16, 16

    x = jax.random.normal(k_x, (batch, in_channels, height, width), jnp.float32)
    weight = 0.1 * jax.random.normal(
        k_w, (kernel_size, kernel_size, in_channels, out_channels), jnp.float32)
    bias = 0.1 * jax.random.normal(k_b, (out_channels,), jnp.float32)

    ref = _reference(x, weight, bias,
                     kernel_size=kernel_size, stride=stride, upsample=upsample)

    # f32 operands: tight check against the XLA convolution.
    layer_f32 = make_upsample_conv_layer(
        weight, bias, kernel_size=kernel_size, stride=stride, upsample=upsample,
        in_hw=(height, width), compute_dtype=jnp.float32)
    out_f32 = jax.block_until_ready(layer_f32(x))
    assert out_f32.shape == ref.shape == (batch, out_channels,
                                          height * upsample, width * upsample)
    assert jnp.allclose(out_f32, ref, atol=1e-4, rtol=1e-4)

    # bf16 operands (default; MXU-native on v6e/v7x): looser tolerance.
    layer_bf16 = make_upsample_conv_layer(
        weight, bias, kernel_size=kernel_size, stride=stride, upsample=upsample,
        in_hw=(height, width))
    out_bf16 = jax.block_until_ready(layer_bf16(x))
    assert out_bf16.shape == ref.shape
    assert jnp.allclose(out_bf16, ref, atol=5e-2, rtol=5e-2)

    print("KERNEL_OK")
</pallas_src>

<mosaic_0001>
module attributes {stable_mosaic.version = 11 : i64} {
  func.func @_conv_row_kernel(%arg0: i32, %arg1: i32, %arg2: memref<1x40x128xf32, #tpu.memory_space<vmem>>, %arg3: memref<3x128x256xf32, #tpu.memory_space<vmem>>, %arg4: memref<1x256xf32, #tpu.memory_space<vmem>>, %arg5: memref<1x32x256xf32, #tpu.memory_space<vmem>>) attributes {dimension_semantics = [#tpu.dimension_semantics<parallel>, #tpu.dimension_semantics<parallel>], iteration_bounds = array<i64: 2, 1>, scalar_prefetch = 0 : i64, scratch_operands = 0 : i64, tpu.core_type = #tpu.core_type<tc>, window_params = [{transform_indices = @transform_0, window_bounds = array<i64: 1, 40, 128>}, {pipeline_mode = #tpu.pipeline_mode<synchronous>, transform_indices = @transform_1, window_bounds = array<i64: 3, 128, 256>}, {pipeline_mode = #tpu.pipeline_mode<synchronous>, transform_indices = @transform_2, window_bounds = array<i64: 1, 256>}, {transform_indices = @transform_3, window_bounds = array<i64: 1, 32, 256>}]} {
    %c32_i32 = arith.constant 32 : i32
    %0 = arith.muli %arg1, %c32_i32 : i32
    %1 = tpu.assume_multiple %0, 8 : i32
    %cst = arith.constant 0.000000e+00 : f32
    %2 = vector.broadcast %cst : f32 to vector<32x256xf32>
    %c0_i32 = arith.constant 0 : i32
    %3 = arith.addi %1, %c0_i32 : i32
    %c0 = arith.constant 0 : index
    %4 = arith.index_cast %3 : i32 to index
    %c0_0 = arith.constant 0 : index
    %5 = vector.load %arg2[%c0, %4, %c0_0] : memref<1x40x128xf32, #tpu.memory_space<vmem>>, vector<1x32x128xf32>
    %6 = vector.shape_cast %5 : vector<1x32x128xf32> to vector<32x128xf32>
    %c0_1 = arith.constant 0 : index
    %c0_2 = arith.constant 0 : index
    %c0_3 = arith.constant 0 : index
    %7 = vector.load %arg3[%c0_1, %c0_2, %c0_3] : memref<3x128x256xf32, #tpu.memory_space<vmem>>, vector<1x128x256xf32>
    %8 = vector.shape_cast %7 : vector<1x128x256xf32> to vector<128x256xf32>
    %cst_4 = arith.constant dense<0.000000e+00> : vector<32x256xf32>
    %9 = tpu.matmul %6, %8, %cst_4 {dimension_numbers = #tpu.dot_dimension_numbers<[1], [0], [0], [1], [0, 0, 1, 1], [], []>} : vector<32x128xf32>, vector<128x256xf32>, vector<32x256xf32> -> vector<32x256xf32>
    %10 = arith.addf %2, %9 : vector<32x256xf32>
    %c1_i32 = arith.constant 1 : i32
    %11 = arith.addi %1, %c1_i32 : i32
    %c0_5 = arith.constant 0 : index
    %12 = arith.index_cast %11 : i32 to index
    %c0_6 = arith.constant 0 : index
    %13 = vector.load %arg2[%c0_5, %12, %c0_6] : memref<1x40x128xf32, #tpu.memory_space<vmem>>, vector<1x32x128xf32>
    %14 = vector.shape_cast %13 : vector<1x32x128xf32> to vector<32x128xf32>
    %c1 = arith.constant 1 : index
    %c0_7 = arith.constant 0 : index
    %c0_8 = arith.constant 0 : index
    %15 = vector.load %arg3[%c1, %c0_7, %c0_8] : memref<3x128x256xf32, #tpu.memory_space<vmem>>, vector<1x128x256xf32>
    %16 = vector.shape_cast %15 : vector<1x128x256xf32> to vector<128x256xf32>
    %cst_9 = arith.constant dense<0.000000e+00> : vector<32x256xf32>
    %17 = tpu.matmul %14, %16, %cst_9 {dimension_numbers = #tpu.dot_dimension_numbers<[1], [0], [0], [1], [0, 0, 1, 1], [], []>} : vector<32x128xf32>, vector<128x256xf32>, vector<32x256xf32> -> vector<32x256xf32>
    %18 = arith.addf %10, %17 : vector<32x256xf32>
    %c2_i32 = arith.constant 2 : i32
    %19 = arith.addi %1, %c2_i32 : i32
    %c0_10 = arith.constant 0 : index
    %20 = arith.index_cast %19 : i32 to index
    %c0_11 = arith.constant 0 : index
    %21 = vector.load %arg2[%c0_10, %20, %c0_11] : memref<1x40x128xf32, #tpu.memory_space<vmem>>, vector<1x32x128xf32>
    %22 = vector.shape_cast %21 : vector<1x32x128xf32> to vector<32x128xf32>
    %c2 = arith.constant 2 : index
    %c0_12 = arith.constant 0 : index
    %c0_13 = arith.constant 0 : index
    %23 = vector.load %arg3[%c2, %c0_12, %c0_13] : memref<3x128x256xf32, #tpu.memory_space<vmem>>, vector<1x128x256xf32>
    %24 = vector.shape_cast %23 : vector<1x128x256xf32> to vector<128x256xf32>
    %cst_14 = arith.constant dense<0.000000e+00> : vector<32x256xf32>
    %25 = tpu.matmul %22, %24, %cst_14 {dimension_numbers = #tpu.dot_dimension_numbers<[1], [0], [0], [1], [0, 0, 1, 1], [], []>} : vector<32x128xf32>, vector<128x256xf32>, vector<32x256xf32> -> vector<32x256xf32>
    %26 = arith.addf %18, %25 : vector<32x256xf32>
    %c0_15 = arith.constant 0 : index
    %c0_16 = arith.constant 0 : index
    %27 = vector.load %arg4[%c0_15, %c0_16] : memref<1x256xf32, #tpu.memory_space<vmem>>, vector<1x256xf32>
    %28 = vector.broadcast %27 : vector<1x256xf32> to vector<32x256xf32>
    %29 = arith.addf %26, %28 : vector<32x256xf32>
    %c0_17 = arith.constant 0 : index
    %c0_18 = arith.constant 0 : index
    %c0_19 = arith.constant 0 : index
    %30 = vector.load %arg5[%c0_17, %c0_18, %c0_19] : memref<1x32x256xf32, #tpu.memory_space<vmem>>, vector<1x32x256xf32>
    %31 = vector.shape_cast %30 : vector<1x32x256xf32> to vector<32x256xf32>
    %32 = vector.shape_cast %29 : vector<32x256xf32> to vector<1x32x256xf32>
    tpu.vector_store %arg5[%c0_17, %c0_18, %c0_19], %32 {strides = array<i32>} : memref<1x32x256xf32, #tpu.memory_space<vmem>>, vector<1x32x256xf32>,
    return
  }
  func.func @transform_0(%arg0: i32, %arg1: i32) -> (i32, i32, i32) {
    %c0_i32 = arith.constant 0 : i32
    %c0_i32_0 = arith.constant 0 : i32
    %c0_i32_1 = arith.constant 0 : i32
    return %arg0, %c0_i32, %c0_i32_0 : i32, i32, i32
  }
  func.func @transform_1(%arg0: i32, %arg1: i32) -> (i32, i32, i32) {
    %c0_i32 = arith.constant 0 : i32
    %c0_i32_0 = arith.constant 0 : i32
    %c0_i32_1 = arith.constant 0 : i32
    %c0_i32_2 = arith.constant 0 : i32
    return %c0_i32, %c0_i32_0, %c0_i32_1 : i32, i32, i32
  }
  func.func @transform_2(%arg0: i32, %arg1: i32) -> (i32, i32) {
    %c0_i32 = arith.constant 0 : i32
    %c0_i32_0 = arith.constant 0 : i32
    %c0_i32_1 = arith.constant 0 : i32
    return %c0_i32, %c0_i32_0 : i32, i32
  }
  func.func @transform_3(%arg0: i32, %arg1: i32) -> (i32, i32, i32) {
    %c0_i32 = arith.constant 0 : i32
    %c0_i32_0 = arith.constant 0 : i32
    return %arg0, %arg1, %c0_i32 : i32, i32, i32
  }
}

module attributes {stable_mosaic.version = 11 : i64} {
  func.func @_conv_row_kernel(%arg0: i32, %arg1: i32, %arg2: memref<1x40x128xf32, #tpu.memory_space<vmem>>, %arg3: memref<3x128x256xf32, #tpu.memory_space<vmem>>, %arg4: memref<1x256xf32, #tpu.memory_space<vmem>>, %arg5: memref<1x32x256xf32, #tpu.memory_space<vmem>>) attributes {dimension_semantics = [#tpu.dimension_semantics<parallel>, #tpu.dimension_semantics<parallel>], iteration_bounds = array<i64: 2, 1>, scalar_prefetch = 0 : i64, scratch_operands = 0 : i64, tpu.core_type = #tpu.core_type<tc>, window_params = [{transform_indices = @transform_0, window_bounds = array<i64: 1, 40, 128>}, {pipeline_mode = #tpu.pipeline_mode<synchronous>, transform_indices = @transform_1, window_bounds = array<i64: 3, 128, 256>}, {pipeline_mode = #tpu.pipeline_mode<synchronous>, transform_indices = @transform_2, window_bounds = array<i64: 1, 256>}, {transform_indices = @transform_3, window_bounds = array<i64: 1, 32, 256>}]} {
    %c32_i32 = arith.constant 32 : i32
    %0 = arith.muli %arg1, %c32_i32 : i32
    %1 = tpu.assume_multiple %0, 8 : i32
    %cst = arith.constant 0.000000e+00 : f32
    %2 = vector.broadcast %cst : f32 to vector<32x256xf32>
    %c0_i32 = arith.constant 0 : i32
    %3 = arith.addi %1, %c0_i32 : i32
    %c0 = arith.constant 0 : index
    %4 = arith.index_cast %3 : i32 to index
    %c0_0 = arith.constant 0 : index
    %5 = vector.load %arg2[%c0, %4, %c0_0] : memref<1x40x128xf32, #tpu.memory_space<vmem>>, vector<1x32x128xf32>
    %6 = vector.shape_cast %5 : vector<1x32x128xf32> to vector<32x128xf32>
    %c0_1 = arith.constant 0 : index
    %c0_2 = arith.constant 0 : index
    %c0_3 = arith.constant 0 : index
    %7 = vector.load %arg3[%c0_1, %c0_2, %c0_3] : memref<3x128x256xf32, #tpu.memory_space<vmem>>, vector<1x128x256xf32>
    %8 = vector.shape_cast %7 : vector<1x128x256xf32> to vector<128x256xf32>
    %cst_4 = arith.constant dense<0.000000e+00> : vector<32x256xf32>
    %9 = tpu.matmul %6, %8, %cst_4 {dimension_numbers = #tpu.dot_dimension_numbers<[1], [0], [0], [1], [0, 0, 1, 1], [], []>} : vector<32x128xf32>, vector<128x256xf32>, vector<32x256xf32> -> vector<32x256xf32>
    %10 = arith.addf %2, %9 : vector<32x256xf32>
    %c1_i32 = arith.constant 1 : i32
    %11 = arith.addi %1, %c1_i32 : i32
    %c0_5 = arith.constant 0 : index
    %12 = arith.index_cast %11 : i32 to index
    %c0_6 = arith.constant 0 : index
    %13 = vector.load %arg2[%c0_5, %12, %c0_6] : memref<1x40x128xf32, #tpu.memory_space<vmem>>, vector<1x32x128xf32>
    %14 = vector.shape_cast %13 : vector<1x32x128xf32> to vector<32x128xf32>
    %c1 = arith.constant 1 : index
    %c0_7 = arith.constant 0 : index
    %c0_8 = arith.constant 0 : index
    %15 = vector.load %arg3[%c1, %c0_7, %c0_8] : memref<3x128x256xf32, #tpu.memory_space<vmem>>, vector<1x128x256xf32>
    %16 = vector.shape_cast %15 : vector<1x128x256xf32> to vector<128x256xf32>
    %cst_9 = arith.constant dense<0.000000e+00> : vector<32x256xf32>
    %17 = tpu.matmul %14, %16, %cst_9 {dimension_numbers = #tpu.dot_dimension_numbers<[1], [0], [0], [1], [0, 0, 1, 1], [], []>} : vector<32x128xf32>, vector<128x256xf32>, vector<32x256xf32> -> vector<32x256xf32>
    %18 = arith.addf %10, %17 : vector<32x256xf32>
    %c2_i32 = arith.constant 2 : i32
    %19 = arith.addi %1, %c2_i32 : i32
    %c0_10 = arith.constant 0 : index
    %20 = arith.index_cast %19 : i32 to index
    %c0_11 = arith.constant 0 : index
    %21 = vector.load %arg2[%c0_10, %20, %c0_11] : memref<1x40x128xf32, #tpu.memory_space<vmem>>, vector<1x32x128xf32>
    %22 = vector.shape_cast %21 : vector<1x32x128xf32> to vector<32x128xf32>
    %c2 = arith.constant 2 : index
    %c0_12 = arith.constant 0 : index
    %c0_13 = arith.constant 0 : index
    %23 = vector.load %arg3[%c2, %c0_12, %c0_13] : memref<3x128x256xf32, #tpu.memory_space<vmem>>, vector<1x128x256xf32>
    %24 = vector.shape_cast %23 : vector<1x128x256xf32> to vector<128x256xf32>
    %cst_14 = arith.constant dense<0.000000e+00> : vector<32x256xf32>
    %25 = tpu.matmul %22, %24, %cst_14 {dimension_numbers = #tpu.dot_dimension_numbers<[1], [0], [0], [1], [0, 0, 1, 1], [], []>} : vector<32x128xf32>, vector<128x256xf32>, vector<32x256xf32> -> vector<32x256xf32>
    %26 = arith.addf %18, %25 : vector<32x256xf32>
    %c0_15 = arith.constant 0 : index
    %c0_16 = arith.constant 0 : index
    %27 = vector.load %arg4[%c0_15, %c0_16] : memref<1x256xf32, #tpu.memory_space<vmem>>, vector<1x256xf32>
    %28 = vector.broadcast %27 : vector<1x256xf32> to vector<32x256xf32>
    %29 = arith.addf %26, %28 : vector<32x256xf32>
    %c0_17 = arith.constant 0 : index
    %c0_18 = arith.constant 0 : index
    %c0_19 = arith.constant 0 : index
    %30 = vector.load %arg5[%c0_17, %c0_18, %c0_19] : memref<1x32x256xf32, #tpu.memory_space<vmem>>, vector<1x32x256xf32>
    %31 = vector.shape_cast %30 : vector<1x32x256xf32> to vector<32x256xf32>
    %32 = vector.shape_cast %29 : vector<32x256xf32> to vector<1x32x256xf32>
    tpu.vector_store %arg5[%c0_17, %c0_18, %c0_19], %32 {strides = array<i32>} : memref<1x32x256xf32, #tpu.memory_space<vmem>>, vector<1x32x256xf32>,
    return
  }
  func.func @transform_0(%arg0: i32, %arg1: i32) -> (i32, i32, i32) {
    %c0_i32 = arith.constant 0 : i32
    %c0_i32_0 = arith.constant 0 : i32
    %c0_i32_1 = arith.constant 0 : i32
    return %arg0, %c0_i32, %c0_i32_0 : i32, i32, i32
  }
  func.func @transform_1(%arg0: i32, %arg1: i32) -> (i32, i32, i32) {
    %c0_i32 = arith.constant 0 : i32
    %c0_i32_0 = arith.constant 0 : i32
    %c0_i32_1 = arith.constant 0 : i32
    %c0_i32_2 = arith.constant 0 : i32
    return %c0_i32, %c0_i32_0, %c0_i32_1 : i32, i32, i32
  }
  func.func @transform_2(%arg0: i32, %arg1: i32) -> (i32, i32) {
    %c0_i32 = arith.constant 0 : i32
    %c0_i32_0 = arith.constant 0 : i32
    %c0_i32_1 = arith.constant 0 : i32
    return %c0_i32, %c0_i32_0 : i32, i32
  }
  func.func @transform_3(%arg0: i32, %arg1: i32) -> (i32, i32, i32) {
    %c0_i32 = arith.constant 0 : i32
    %c0_i32_0 = arith.constant 0 : i32
    return %arg0, %arg1, %c0_i32 : i32, i32, i32
  }
}

</mosaic_0001>

<llo_original>
// kernel: tpu_custom_call.1
$region0: #{tpu_custom_call.1}
  #allocation0 [shape = 'u32[]', space=smem, size = 0x4, offset = 0x4, fixed_abs, tag = 'smem constant byte address 0x4 - core index']
  #allocation1 [shape = 'u32[144,128]{1,0:T(1,128)}', space=vmem, size = 0x12000, scoped, tag = 'internal scratch']
  %s0 = inlined_call_operand.hbm [shape: f32[2,40,128], index: 0, kind: input, shape index: {}]
  %s1 = inlined_call_operand.hbm [shape: f32[3,128,256], index: 1, kind: input, shape index: {}]
  %s2 = inlined_call_operand.vmem [shape: f32[1,256], index: 2, kind: input, shape index: {}]
  %s3 = inlined_call_operand.hbm [shape: f32[2,32,256], index: 3, kind: output, shape index: {}]
  %s4 = sld [smem:[#allocation0]]
  $region53: #{tpu_custom_call.1} parent=0
    _
  %s6 = ssub.s32 1, %s4
  %s7 = scalar_select 0, %s6, %s4
  $region1: #{tpu_custom_call.1} parent=0
    #allocation2 [shape = 'u8[40960]{0}', space=vmem, size = 0xa000, scoped, tag = 'input window, operand 0']
    #allocation3 [shape = 's32[2]{0}', space=sflag, size = 0x8, scoped, tag = 'scoped memory for tpu_custom_call.1']
    #allocation4 [shape = 's32[2]{0}', space=sflag, size = 0x8, scoped, tag = 'scoped memory for tpu_custom_call.1']
    #allocation5 [shape = 'u8[393216]{0}', space=vmem, size = 0x60000, scoped, tag = 'input window, operand 1, single buffered']
    #allocation6 [shape = 's32[1]{0}', space=sflag, size = 0x4, scoped, tag = 'scoped memory for tpu_custom_call.1']
    #allocation7 [shape = 'u8[65536]{0}', space=vmem, size = 0x10000, scoped, tag = 'output window, operand 0']
    %8 = vsyncpa [#allocation3], 0
    %s9 = scalar_lea.sflag [#allocation3], 1
    %10 = vsyncpa %s9, 0
    %11 = vsyncpa [#allocation6], 0
    %12 = vsyncpa [#allocation4], 0
    %s13 = scalar_lea.sflag [#allocation4], 1
    %14 = vsyncpa %s13, 0
    loop: start=0, step=1, limit=4
    $region2: #{tpu_custom_call.1} parent=1 // loop_pre_header
      _
    $region3: #{tpu_custom_call.1} parent=1 // loop_header
      %s16 = sphi 0, %s20
      %p17 = scmp.ge.s32.totalorder %s16, 4
      %s23 = sphi 0, %s35
      %s24 = sphi 0, %s31
      %s25 = sphi 0, %s23
      %s26 = sphi 0, %s24
      %s27 = sphi 0, %s25
      %s28 = sphi 0, %s26
      %s38 = sphi 0, %s40
      %s41 = sphi 0, %s38
      %s42 = sphi 0, %s41
      %s58 = sphi 0, %s42
      %s62 = sphi 0, %s62
      %s64 = sphi 0, %s62
      %s65 = sphi 0, %s64
      %s79 = sphi 0, %s65
      %s83 = sphi 0, %s83
      %s85 = sphi 0, %s83
      %s86 = sphi 0, %s85
      %s100 = sphi 0, %s86
      %s108 = sphi 0, %s110
      %s111 = sphi 0, %s108
      %s112 = sphi 0, %s111
      %s128 = sphi 0, %s112
    $region4: #{tpu_custom_call.1} parent=1 // loop_header_branch
      %19 = sbr.rel (%p17) target = $region8
    $region5: #{tpu_custom_call.1} parent=1 // loop_body
      %s21 = ssub.s32 %s16, 1
      %s22 = ssub.s32 %s16, 2
      %s29 = sadd.s32 1, %s24
      %p30 = scmp.ge.s32.totalorder %s29, 1
      %s31 = scalar_select %p30, 0, %s29
      %s32 = sadd.s32 1, %s23
      %s33 = scalar_select %p30, %s32, %s23
      %p34 = scmp.ge.s32.totalorder %s33, 2
      %s35 = scalar_select %p34, 0, %s33
      %s36 = ssub.s32 %s23, %s35
      %p37 = scmp.eq.s32.totalorder %s36, 0
      %s39 = sadd.s32 %s38, 1
      %s40 = scalar_select %p37, %s38, %s39
      %p43 = pneg %p37
      %p44 = scmp.eq.s32.totalorder %s16, 1
      %p45 = por %p43, %p44
      %p46 = scmp.ne.s32.totalorder %s38, %s41
      %p47 = scmp.eq.s32.totalorder %s16, 0
      %p48 = por %p46, %p47
      %p49 = scmp.ne.s32.totalorder %s38, %s41
      %p50 = scmp.eq.s32.totalorder %s21, 1
      %p51 = por %p49, %p50
      %p52 = scmp.ne.s32.totalorder %s41, %s42
      %p53 = scmp.eq.s32.totalorder %s21, 0
      %p54 = por %p52, %p53
      %p55 = scmp.ne.s32.totalorder %s41, %s42
      %p56 = scmp.eq.s32.totalorder %s22, 1
      %p57 = por %p55, %p56
      %p59 = scmp.ne.s32.totalorder %s42, %s58
      %p60 = scmp.eq.s32.totalorder %s22, 0
      %p61 = por %p59, %p60
      %s63 = sadd.s32 %s62, 1
      %p66 = scmp.eq.s32.totalorder %s16, 1
      %p67 = scmp.ne.s32.totalorder %s62, %s64
      %p68 = scmp.eq.s32.totalorder %s16, 0
      %p69 = por %p67, %p68
      %p70 = scmp.ne.s32.totalorder %s62, %s64
      %p71 = scmp.eq.s32.totalorder %s21, 1
      %p72 = por %p70, %p71
      %p73 = scmp.ne.s32.totalorder %s64, %s65
      %p74 = scmp.eq.s32.totalorder %s21, 0
      %p75 = por %p73, %p74
      %p76 = scmp.ne.s32.totalorder %s64, %s65
      %p77 = scmp.eq.s32.totalorder %s22, 1
      %p78 = por %p76, %p77
      %p80 = scmp.ne.s32.totalorder %s65, %s79
      %p81 = scmp.eq.s32.totalorder %s22, 0
      %p82 = por %p80, %p81
      %s84 = sadd.s32 %s83, 1
      %p87 = scmp.eq.s32.totalorder %s16, 1
      %p88 = scmp.ne.s32.totalorder %s83, %s85
      %p89 = scmp.eq.s32.totalorder %s16, 0
      %p90 = por %p88, %p89
      %p91 = scmp.ne.s32.totalorder %s83, %s85
      %p92 = scmp.eq.s32.totalorder %s21, 1
      %p93 = por %p91, %p92
      %p94 = scmp.ne.s32.totalorder %s85, %s86
      %p95 = scmp.eq.s32.totalorder %s21, 0
      %p96 = por %p94, %p95
      %p97 = scmp.ne.s32.totalorder %s85, %s86
      %p98 = scmp.eq.s32.totalorder %s22, 1
      %p99 = por %p97, %p98
      %p101 = scmp.ne.s32.totalorder %s86, %s100
      %p102 = scmp.eq.s32.totalorder %s22, 0
      %p103 = por %p101, %p102
      %s104 = ssub.s32 %s23, %s35
      %s105 = ssub.s32 %s24, %s31
      %s106 = sor.u32 %s104, %s105
      %p107 = scmp.eq.s32.totalorder %s106, 0
      %s109 = sadd.s32 %s108, 1
      %s110 = scalar_select %p107, %s108, %s109
      %p113 = pneg %p107
      %p114 = scmp.eq.s32.totalorder %s16, 1
      %p115 = por %p113, %p114
      %p116 = scmp.ne.s32.totalorder %s108, %s111
      %p117 = scmp.eq.s32.totalorder %s16, 0
      %p118 = por %p116, %p117
      %p119 = scmp.ne.s32.totalorder %s108, %s111
      %p120 = scmp.eq.s32.totalorder %s21, 1
      %p121 = por %p119, %p120
      %p122 = scmp.ne.s32.totalorder %s111, %s112
      %p123 = scmp.eq.s32.totalorder %s21, 0
      %p124 = por %p122, %p123
      %p125 = scmp.ne.s32.totalorder %s111, %s112
      %p126 = scmp.eq.s32.totalorder %s22, 1
      %p127 = por %p125, %p126
      %p129 = scmp.ne.s32.totalorder %s112, %s128
      %p130 = scmp.eq.s32.totalorder %s22, 0
      %p131 = por %p129, %p130
      %p132 = scmp.le.s32.totalorder 1, %s16
      %p133 = scmp.lt.s32.totalorder %s16, 3
      %p134 = pnand %p132, %p133
      %p135 = pneg %p134
      // Predicated region
      $region9: #{tpu_custom_call.1} parent=5 // pred_check
        _
      $region10: #{tpu_custom_call.1} parent=5 // pred_check_branch
        %137 = sbr.rel (%p134) target = $region12
      $region11: #{tpu_custom_call.1} parent=5 // pred_region
        %s138 = ssub.s32 %s16, 1
        // Predicated region
        $region13: #{tpu_custom_call.1} parent=11 // pred_check
          %p139 = pneg %p75
        $region14: #{tpu_custom_call.1} parent=11 // pred_check_branch
          %141 = sbr.rel (%p139) target = $region16
        $region15: #{tpu_custom_call.1} parent=11 // pred_region
          %s143 = ssub.s32 12288, 12288
          %144 = vsyncadd [#allocation6], %s143
          %s145 = sshll.u32 [#allocation5], 4
          %s146 = int_to_ptr.vmem [resolvable:$true] %s145
          %151 = dma.hbm_to_vmem [thread:$0]  %s1, 12288, %s146, [#allocation6], 256, 256, 16
        $region16: #{tpu_custom_call.1} parent=11 // pred_fallthru
          _
        // Predicated region
        $region17: #{tpu_custom_call.1} parent=11 // pred_check
          %p152 = pneg %p96
        $region18: #{tpu_custom_call.1} parent=11 // pred_check_branch
          %154 = sbr.rel (%p152) target = $region20
        $region19: #{tpu_custom_call.1} parent=11 // pred_region
          _
        $region20: #{tpu_custom_call.1} parent=11 // pred_fallthru
          _
      $region12: #{tpu_custom_call.1} parent=5 // pred_fallthru
        _
      %p155 = scmp.lt.s32.totalorder %s16, 2
      // Predicated region
      $region21: #{tpu_custom_call.1} parent=5 // pred_check
        %p156 = pneg %p155
      $region22: #{tpu_custom_call.1} parent=5 // pred_check_branch
        %158 = sbr.rel (%p156) target = $region24
      $region23: #{tpu_custom_call.1} parent=5 // pred_region
        // Predicated region
        $region25: #{tpu_custom_call.1} parent=23 // pred_check
          %p159 = pneg %p48
        $region26: #{tpu_custom_call.1} parent=23 // pred_check_branch
          %161 = sbr.rel (%p159) target = $region28
        $region27: #{tpu_custom_call.1} parent=23 // pred_region
          %s162 = sand.u32 %s38, 1
          %s163 = scalar_lea.sflag [#allocation3], %s162
          %s164 = sand.u32 %s38, 1
          %s165 = smul.addr %s164, 40
          %s166 = scalar_lea.vmem [#allocation2], %s165
          %s168 = ssub.s32 640, 640
          %169 = vsyncadd %s163, %s168
          %s170 = smul.addr %s23, 5
          %s171 = smul.addr %s170, 128
          %s172 = scalar_lea.hbm %s0, %s171
          %s173 = sshll.u32 %s166, 4
          %s174 = int_to_ptr.vmem [resolvable:$true] %s173
          %179 = dma.hbm_to_vmem [thread:$0]  %s172, 640, %s174, %s163, 128, 128, 8
        $region28: #{tpu_custom_call.1} parent=23 // pred_fallthru
          _
      $region24: #{tpu_custom_call.1} parent=5 // pred_fallthru
        _
      %p180 = scmp.le.s32.totalorder 1, %s16
      %p181 = scmp.lt.s32.totalorder %s16, 3
      %p182 = pnand %p180, %p181
      %p183 = pneg %p182
      // Predicated region
      $region29: #{tpu_custom_call.1} parent=5 // pred_check
        _
      $region30: #{tpu_custom_call.1} parent=5 // pred_check_branch
        %185 = sbr.rel (%p182) target = $region32
      $region31: #{tpu_custom_call.1} parent=5 // pred_region
        %s186 = ssub.s32 %s16, 1
        %s187 = sand.u32 %s41, 1
        %s188 = scalar_lea.sflag [#allocation3], %s187
        %s189 = sand.u32 %s41, 1
        %s190 = smul.addr %s189, 40
        %s191 = scalar_lea.vmem [#allocation2], %s190
        // Predicated region
        $region33: #{tpu_custom_call.1} parent=31 // pred_check
          %p192 = pneg %p54
        $region34: #{tpu_custom_call.1} parent=31 // pred_check_branch
          %194 = sbr.rel (%p192) target = $region36
        $region35: #{tpu_custom_call.1} parent=31 // pred_region
          %195 = dma.done %s188, 640
        $region36: #{tpu_custom_call.1} parent=31 // pred_fallthru
          _
        // Predicated region
        $region37: #{tpu_custom_call.1} parent=31 // pred_check
          %p196 = pneg %p75
        $region38: #{tpu_custom_call.1} parent=31 // pred_check_branch
          %198 = sbr.rel (%p196) target = $region40
        $region39: #{tpu_custom_call.1} parent=31 // pred_region
          %199 = dma.done [#allocation6], 12288
        $region40: #{tpu_custom_call.1} parent=31 // pred_fallthru
          _
        %s200 = sand.u32 %s41, 1
        %s201 = scalar_lea.sflag [#allocation3], %s200
        %s202 = sand.u32 %s41, 1
        %s203 = smul.addr %s202, 40
        %s204 = scalar_lea.vmem [#allocation2], %s203
        %p205 = pneg %p54
        %p206 = pneg %p51
        %p207 = pneg %p75
        %p208 = pneg %p72
        %p209 = pneg %p96
        %p210 = pneg %p93
        %p211 = pneg %p124
        %p212 = pneg %p121
        %s213 = sand.u32 %s111, 1
        %s214 = scalar_lea.sflag [#allocation4], %s213
        %s215 = sand.u32 %s111, 1
        %s216 = smul.addr %s215, 64
        %s217 = scalar_lea.vmem [#allocation7], %s216
        %s218 = smul.u32 4, %s26
        %s219 = smul.u32 %s26, 32
        %s220 = scalar_lea.vmem %s191, %s219 [#allocation2]
        %v221 = vld [vmem:[%s220] sm:$0xff]
        %v222 = vld [vmem:[%s220 + $0x8] sm:$0xff]
        %v223 = vld [vmem:[%s220 + $0x10] sm:$0xff]
        %v224 = vld [vmem:[%s220 + $0x18] sm:$0xff]
        %v225 = vld [vmem:[#allocation5] sm:$0xff]
        %v226 = vld [vmem:[#allocation5 + $0x8] sm:$0xff]
        %v227 = vld [vmem:[#allocation5 + $0x10] sm:$0xff]
        %v228 = vld [vmem:[#allocation5 + $0x18] sm:$0xff]
        %v229 = vld [vmem:[#allocation5 + $0x20] sm:$0xff]
        %v230 = vld [vmem:[#allocation5 + $0x28] sm:$0xff]
        %v231 = vld [vmem:[#allocation5 + $0x30] sm:$0xff]
        %v232 = vld [vmem:[#allocation5 + $0x38] sm:$0xff]
        %v233 = vld [vmem:[#allocation5 + $0x40] sm:$0xff]
        %v234 = vld [vmem:[#allocation5 + $0x48] sm:$0xff]
        %v235 = vld [vmem:[#allocation5 + $0x50] sm:$0xff]
        %v236 = vld [vmem:[#allocation5 + $0x58] sm:$0xff]
        %v237 = vld [vmem:[#allocation5 + $0x60] sm:$0xff]
        %v238 = vld [vmem:[#allocation5 + $0x68] sm:$0xff]
        %v239 = vld [vmem:[#allocation5 + $0x70] sm:$0xff]
        %v240 = vld [vmem:[#allocation5 + $0x78] sm:$0xff]
        %v241 = vld [vmem:[#allocation5 + $0x80] sm:$0xff]
        %v242 = vld [vmem:[#allocation5 + $0x88] sm:$0xff]
        %v243 = vld [vmem:[#allocation5 + $0x90] sm:$0xff]
        %v244 = vld [vmem:[#allocation5 + $0x98] sm:$0xff]
        %v245 = vld [vmem:[#allocation5 + $0xa0] sm:$0xff]
        %v246 = vld [vmem:[#allocation5 + $0xa8] sm:$0xff]
        %v247 = vld [vmem:[#allocation5 + $0xb0] sm:$0xff]
        %v248 = vld [vmem:[#allocation5 + $0xb8] sm:$0xff]
        %v249 = vld [vmem:[#allocation5 + $0xc0] sm:$0xff]
        %v250 = vld [vmem:[#allocation5 + $0xc8] sm:$0xff]
        %v251 = vld [vmem:[#allocation5 + $0xd0] sm:$0xff]
        %v252 = vld [vmem:[#allocation5 + $0xd8] sm:$0xff]
        %v253 = vld [vmem:[#allocation5 + $0xe0] sm:$0xff]
        %v254 = vld [vmem:[#allocation5 + $0xe8] sm:$0xff]
        %v255 = vld [vmem:[#allocation5 + $0xf0] sm:$0xff]
        %v256 = vld [vmem:[#allocation5 + $0xf8] sm:$0xff]
        %s257 = sadd.s32 %s219, 1
        %s258 = scalar_lea.vmem %s191, %s257 [#allocation2]
        %v259 = vld [vmem:[%s258] sm:$0xff]
        %v260 = vld [vmem:[%s258 + $0x8] sm:$0xff]
        %v261 = vld [vmem:[%s258 + $0x10] sm:$0xff]
        %v262 = vld [vmem:[%s258 + $0x18] sm:$0xff]
        %s263 = scalar_lea.vmem [#allocation5], 256
        %v264 = vld [vmem:[%s263] sm:$0xff]
        %v265 = vld [vmem:[%s263 + $0x8] sm:$0xff]
        %v266 = vld [vmem:[%s263 + $0x10] sm:$0xff]
        %v267 = vld [vmem:[%s263 + $0x18] sm:$0xff]
        %v268 = vld [vmem:[%s263 + $0x20] sm:$0xff]
        %v269 = vld [vmem:[%s263 + $0x28] sm:$0xff]
        %v270 = vld [vmem:[%s263 + $0x30] sm:$0xff]
        %v271 = vld [vmem:[%s263 + $0x38] sm:$0xff]
        %v272 = vld [vmem:[%s263 + $0x40] sm:$0xff]
        %v273 = vld [vmem:[%s263 + $0x48] sm:$0xff]
        %v274 = vld [vmem:[%s263 + $0x50] sm:$0xff]
        %v275 = vld [vmem:[%s263 + $0x58] sm:$0xff]
        %v276 = vld [vmem:[%s263 + $0x60] sm:$0xff]
        %v277 = vld [vmem:[%s263 + $0x68] sm:$0xff]
        %v278 = vld [vmem:[%s263 + $0x70] sm:$0xff]
        %v279 = vld [vmem:[%s263 + $0x78] sm:$0xff]
        %v280 = vld [vmem:[%s263 + $0x80] sm:$0xff]
        %v281 = vld [vmem:[%s263 + $0x88] sm:$0xff]
        %v282 = vld [vmem:[%s263 + $0x90] sm:$0xff]
        %v283 = vld [vmem:[%s263 + $0x98] sm:$0xff]
        %v284 = vld [vmem:[%s263 + $0xa0] sm:$0xff]
        %v285 = vld [vmem:[%s263 + $0xa8] sm:$0xff]
        %v286 = vld [vmem:[%s263 + $0xb0] sm:$0xff]
        %v287 = vld [vmem:[%s263 + $0xb8] sm:$0xff]
        %v288 = vld [vmem:[%s263 + $0xc0] sm:$0xff]
        %v289 = vld [vmem:[%s263 + $0xc8] sm:$0xff]
        %v290 = vld [vmem:[%s263 + $0xd0] sm:$0xff]
        %v291 = vld [vmem:[%s263 + $0xd8] sm:$0xff]
        %v292 = vld [vmem:[%s263 + $0xe0] sm:$0xff]
        %v293 = vld [vmem:[%s263 + $0xe8] sm:$0xff]
        %v294 = vld [vmem:[%s263 + $0xf0] sm:$0xff]
        %v295 = vld [vmem:[%s263 + $0xf8] sm:$0xff]
        %296 = vmatprep.subr.mxu0 %v265
        %297 = vmatpush1.msra.mxu0 %v264
        %298 = vmatprep.subr.mxu0 %v267
        %299 = vmatpush1.msra.mxu0 %v266
        %300 = vmatprep.subr.mxu0 %v269
        %301 = vmatpush1.msra.mxu0 %v268
        %302 = vmatprep.subr.mxu0 %v271
        %303 = vmatpush1.msra.mxu0 %v270
        %304 = vmatprep.subr.mxu0 %v273
        %305 = vmatpush1.msra.mxu0 %v272
        %306 = vmatprep.subr.mxu0 %v275
        %307 = vmatpush1.msra.mxu0 %v274
        %308 = vmatprep.subr.mxu0 %v277
        %309 = vmatpush1.msra.mxu0 %v276
        %310 = vmatprep.subr.mxu0 %v279
        %311 = vmatpush1.msra.mxu0 %v278
        %312 = vmatprep.subr.mxu0 %v281
        %313 = vmatpush1.msra.mxu0 %v280
        %314 = vmatprep.subr.mxu0 %v283
        %315 = vmatpush1.msra.mxu0 %v282
        %316 = vmatprep.subr.mxu0 %v285
        %317 = vmatpush1.msra.mxu0 %v284
        %318 = vmatprep.subr.mxu0 %v287
        %319 = vmatpush1.msra.mxu0 %v286
        %320 = vmatprep.subr.mxu0 %v289
        %321 = vmatpush1.msra.mxu0 %v288
        %322 = vmatprep.subr.mxu0 %v291
        %323 = vmatpush1.msra.mxu0 %v290
        %324 = vmatprep.subr.mxu0 %v293
        %325 = vmatpush1.msra.mxu0 %v292
        %326 = vmatprep.subr.mxu0 %v295
        %327 = vmatpush1.msra.mxu0 %v294
        %328 = vmatprep.subr.mxu0 0.0
        %329 = vmatpush1.msra.mxu0 0.0
        %330 = vmatprep.subr.mxu0 0.0
        %331 = vmatpush1.msra.mxu0 0.0
        %332 = vmatprep.subr.mxu0 0.0
        %333 = vmatpush1.msra.mxu0 0.0
        %334 = vmatprep.subr.mxu0 0.0
        %335 = vmatpush1.msra.mxu0 0.0
        %336 = vmatprep.subr.mxu0 0.0
        %337 = vmatpush1.msra.mxu0 0.0
        %338 = vmatprep.subr.mxu0 0.0
        %339 = vmatpush1.msra.mxu0 0.0
        %340 = vmatprep.subr.mxu0 0.0
        %341 = vmatpush1.msra.mxu0 0.0
        %342 = vmatprep.subr.mxu0 0.0
        %343 = vmatpush1.msra.mxu0 0.0
        %344 = vmatprep.subr.mxu0 0.0
        %345 = vmatpush1.msra.mxu0 0.0
        %346 = vmatprep.subr.mxu0 0.0
        %347 = vmatpush1.msra.mxu0 0.0
        %348 = vmatprep.subr.mxu0 0.0
        %349 = vmatpush1.msra.mxu0 0.0
        %350 = vmatprep.subr.mxu0 0.0
        %351 = vmatpush1.msra.mxu0 0.0
        %352 = vmatprep.subr.mxu0 0.0
        %353 = vmatpush1.msra.mxu0 0.0
        %354 = vmatprep.subr.mxu0 0.0
        %355 = vmatpush1.msra.mxu0 0.0
        %356 = vmatprep.subr.mxu0 0.0
        %357 = vmatpush1.msra.mxu0 0.0
        %358 = vmatprep.subr.mxu0 0.0
        %359 = vmatpush1.msra.mxu0 0.0
        %360 = vmatprep.mubr.f32.mxu0 0.0
        %361 = vmatmul.mubr.f32.gmra.mrb[0].mxu0 %v259
        %v362 = vpop.f32.mrb[0].mxu0
        %v363 = vadd.f32 0.0, %v362
        %v364 = vpop.f32.mrb[0].mxu0
        %v365 = vadd.f32 0.0, %v364
        %366 = vmatprep.mubr.f32.mxu0 0.0
        %367 = vmatmul.mubr.f32.gmra.mrb[0].mxu0 %v260
        %v368 = vpop.f32.mrb[0].mxu0
        %v369 = vadd.f32 0.0, %v368
        %v370 = vpop.f32.mrb[0].mxu0
        %v371 = vadd.f32 0.0, %v370
        %372 = vmatprep.mubr.f32.mxu0 0.0
        %373 = vmatmul.mubr.f32.gmra.mrb[0].mxu0 %v261
        %v374 = vpop.f32.mrb[0].mxu0
        %v375 = vadd.f32 0.0, %v374
        %v376 = vpop.f32.mrb[0].mxu0
        %v377 = vadd.f32 0.0, %v376
        %378 = vmatprep.mubr.f32.mxu0 0.0
        %379 = vmatmul.mubr.f32.gmra.mrb[0].mxu0 %v262
        %v380 = vpop.f32.mrb[0].mxu0
        %v381 = vadd.f32 0.0, %v380
        %v382 = vpop.f32.mrb[0].mxu0
        %v383 = vadd.f32 0.0, %v382
        %384 = vdwg.mxu0
        %385 = vmatprep.subr.mxu0 %v226
        %386 = vmatpush1.msra.mxu0 %v225
        %387 = vmatprep.subr.mxu0 %v228
        %388 = vmatpush1.msra.mxu0 %v227
        %389 = vmatprep.subr.mxu0 %v230
        %390 = vmatpush1.msra.mxu0 %v229
        %391 = vmatprep.subr.mxu0 %v232
        %392 = vmatpush1.msra.mxu0 %v231
        %393 = vmatprep.subr.mxu0 %v234
        %394 = vmatpush1.msra.mxu0 %v233
        %395 = vmatprep.subr.mxu0 %v236
        %396 = vmatpush1.msra.mxu0 %v235
        %397 = vmatprep.subr.mxu0 %v238
        %398 = vmatpush1.msra.mxu0 %v237
        %399 = vmatprep.subr.mxu0 %v240
        %400 = vmatpush1.msra.mxu0 %v239
        %401 = vmatprep.subr.mxu0 %v242
        %402 = vmatpush1.msra.mxu0 %v241
        %403 = vmatprep.subr.mxu0 %v244
        %404 = vmatpush1.msra.mxu0 %v243
        %405 = vmatprep.subr.mxu0 %v246
        %406 = vmatpush1.msra.mxu0 %v245
        %407 = vmatprep.subr.mxu0 %v248
        %408 = vmatpush1.msra.mxu0 %v247
        %409 = vmatprep.subr.mxu0 %v250
        %410 = vmatpush1.msra.mxu0 %v249
        %411 = vmatprep.subr.mxu0 %v252
        %412 = vmatpush1.msra.mxu0 %v251
        %413 = vmatprep.subr.mxu0 %v254
        %414 = vmatpush1.msra.mxu0 %v253
        %415 = vmatprep.subr.mxu0 %v256
        %416 = vmatpush1.msra.mxu0 %v255
        %417 = vmatprep.subr.mxu0 0.0
        %418 = vmatpush1.msra.mxu0 0.0
        %419 = vmatprep.subr.mxu0 0.0
        %420 = vmatpush1.msra.mxu0 0.0
        %421 = vmatprep.subr.mxu0 0.0
        %422 = vmatpush1.msra.mxu0 0.0
        %423 = vmatprep.subr.mxu0 0.0
        %424 = vmatpush1.msra.mxu0 0.0
        %425 = vmatprep.subr.mxu0 0.0
        %426 = vmatpush1.msra.mxu0 0.0
        %427 = vmatprep.subr.mxu0 0.0
        %428 = vmatpush1.msra.mxu0 0.0
        %429 = vmatprep.subr.mxu0 0.0
        %430 = vmatpush1.msra.mxu0 0.0
        %431 = vmatprep.subr.mxu0 0.0
        %432 = vmatpush1.msra.mxu0 0.0
        %433 = vmatprep.subr.mxu0 0.0
        %434 = vmatpush1.msra.mxu0 0.0
        %435 = vmatprep.subr.mxu0 0.0
        %436 = vmatpush1.msra.mxu0 0.0
        %437 = vmatprep.subr.mxu0 0.0
        %438 = vmatpush1.msra.mxu0 0.0
        %439 = vmatprep.subr.mxu0 0.0
        %440 = vmatpush1.msra.mxu0 0.0
        %441 = vmatprep.subr.mxu0 0.0
        %442 = vmatpush1.msra.mxu0 0.0
        %443 = vmatprep.subr.mxu0 0.0
        %444 = vmatpush1.msra.mxu0 0.0
        %445 = vmatprep.subr.mxu0 0.0
        %446 = vmatpush1.msra.mxu0 0.0
        %447 = vmatprep.subr.mxu0 0.0
        %448 = vmatpush1.msra.mxu0 0.0
        %449 = vmatprep.mubr.f32.mxu0 0.0
        %450 = vmatmul.mubr.f32.gmra.mrb[0].mxu0 %v221
        %v451 = vpop.f32.mrb[0].mxu0
        %v452 = vadd.f32 %v363, %v451
        %v453 = vpop.f32.mrb[0].mxu0
        %v454 = vadd.f32 %v365, %v453
        %455 = vmatprep.mubr.f32.mxu0 0.0
        %456 = vmatmul.mubr.f32.gmra.mrb[0].mxu0 %v222
        %v457 = vpop.f32.mrb[0].mxu0
        %v458 = vadd.f32 %v369, %v457
        %v459 = vpop.f32.mrb[0].mxu0
        %v460 = vadd.f32 %v371, %v459
        %461 = vmatprep.mubr.f32.mxu0 0.0
        %462 = vmatmul.mubr.f32.gmra.mrb[0].mxu0 %v223
        %v463 = vpop.f32.mrb[0].mxu0
        %v464 = vadd.f32 %v375, %v463
        %v465 = vpop.f32.mrb[0].mxu0
        %v466 = vadd.f32 %v377, %v465
        %467 = vmatprep.mubr.f32.mxu0 0.0
        %468 = vmatmul.mubr.f32.gmra.mrb[0].mxu0 %v224
        %v469 = vpop.f32.mrb[0].mxu0
        %v470 = vadd.f32 %v381, %v469
        %v471 = vpop.f32.mrb[0].mxu0
        %v472 = vadd.f32 %v383, %v471
        %473 = vdwg.mxu0
        %s474 = sadd.s32 %s219, 2
        %s475 = scalar_lea.vmem %s191, %s474 [#allocation2]
        %v476 = vld [vmem:[%s475] sm:$0xff]
        %v477 = vld [vmem:[%s475 + $0x8] sm:$0xff]
        %v478 = vld [vmem:[%s475 + $0x10] sm:$0xff]
        %v479 = vld [vmem:[%s475 + $0x18] sm:$0xff]
        %s480 = scalar_lea.vmem [#allocation5], 512
        %v481 = vld [vmem:[%s480] sm:$0xff]
        %v482 = vld [vmem:[%s480 + $0x8] sm:$0xff]
        %v483 = vld [vmem:[%s480 + $0x10] sm:$0xff]
        %v484 = vld [vmem:[%s480 + $0x18] sm:$0xff]
        %v485 = vld [vmem:[%s480 + $0x20] sm:$0xff]
        %v486 = vld [vmem:[%s480 + $0x28] sm:$0xff]
        %v487 = vld [vmem:[%s480 + $0x30] sm:$0xff]
        %v488 = vld [vmem:[%s480 + $0x38] sm:$0xff]
        %v489 = vld [vmem:[%s480 + $0x40] sm:$0xff]
        %v490 = vld [vmem:[%s480 + $0x48] sm:$0xff]
        %v491 = vld [vmem:[%s480 + $0x50] sm:$0xff]
        %v492 = vld [vmem:[%s480 + $0x58] sm:$0xff]
        %v493 = vld [vmem:[%s480 + $0x60] sm:$0xff]
        %v494 = vld [vmem:[%s480 + $0x68] sm:$0xff]
        %v495 = vld [vmem:[%s480 + $0x70] sm:$0xff]
        %v496 = vld [vmem:[%s480 + $0x78] sm:$0xff]
        %v497 = vld [vmem:[%s480 + $0x80] sm:$0xff]
        %v498 = vld [vmem:[%s480 + $0x88] sm:$0xff]
        %v499 = vld [vmem:[%s480 + $0x90] sm:$0xff]
        %v500 = vld [vmem:[%s480 + $0x98] sm:$0xff]
        %v501 = vld [vmem:[%s480 + $0xa0] sm:$0xff]
        %v502 = vld [vmem:[%s480 + $0xa8] sm:$0xff]
        %v503 = vld [vmem:[%s480 + $0xb0] sm:$0xff]
        %v504 = vld [vmem:[%s480 + $0xb8] sm:$0xff]
        %v505 = vld [vmem:[%s480 + $0xc0] sm:$0xff]
        %v506 = vld [vmem:[%s480 + $0xc8] sm:$0xff]
        %v507 = vld [vmem:[%s480 + $0xd0] sm:$0xff]
        %v508 = vld [vmem:[%s480 + $0xd8] sm:$0xff]
        %v509 = vld [vmem:[%s480 + $0xe0] sm:$0xff]
        %v510 = vld [vmem:[%s480 + $0xe8] sm:$0xff]
        %v511 = vld [vmem:[%s480 + $0xf0] sm:$0xff]
        %v512 = vld [vmem:[%s480 + $0xf8] sm:$0xff]
        %513 = vmatprep.subr.mxu0 %v482
        %514 = vmatpush1.msra.mxu0 %v481
        %515 = vmatprep.subr.mxu0 %v484
        %516 = vmatpush1.msra.mxu0 %v483
        %517 = vmatprep.subr.mxu0 %v486
        %518 = vmatpush1.msra.mxu0 %v485
        %519 = vmatprep.subr.mxu0 %v488
        %520 = vmatpush1.msra.mxu0 %v487
        %521 = vmatprep.subr.mxu0 %v490
        %522 = vmatpush1.msra.mxu0 %v489
        %523 = vmatprep.subr.mxu0 %v492
        %524 = vmatpush1.msra.mxu0 %v491
        %525 = vmatprep.subr.mxu0 %v494
        %526 = vmatpush1.msra.mxu0 %v493
        %527 = vmatprep.subr.mxu0 %v496
        %528 = vmatpush1.msra.mxu0 %v495
        %529 = vmatprep.subr.mxu0 %v498
        %530 = vmatpush1.msra.mxu0 %v497
        %531 = vmatprep.subr.mxu0 %v500
        %532 = vmatpush1.msra.mxu0 %v499
        %533 = vmatprep.subr.mxu0 %v502
        %534 = vmatpush1.msra.mxu0 %v501
        %535 = vmatprep.subr.mxu0 %v504
        %536 = vmatpush1.msra.mxu0 %v503
        %537 = vmatprep.subr.mxu0 %v506
        %538 = vmatpush1.msra.mxu0 %v505
        %539 = vmatprep.subr.mxu0 %v508
        %540 = vmatpush1.msra.mxu0 %v507
        %541 = vmatprep.subr.mxu0 %v510
        %542 = vmatpush1.msra.mxu0 %v509
        %543 = vmatprep.subr.mxu0 %v512
        %544 = vmatpush1.msra.mxu0 %v511
        %545 = vmatprep.subr.mxu0 0.0
        %546 = vmatpush1.msra.mxu0 0.0
        %547 = vmatprep.subr.mxu0 0.0
        %548 = vmatpush1.msra.mxu0 0.0
        %549 = vmatprep.subr.mxu0 0.0
        %550 = vmatpush1.msra.mxu0 0.0
        %551 = vmatprep.subr.mxu0 0.0
        %552 = vmatpush1.msra.mxu0 0.0
        %553 = vmatprep.subr.mxu0 0.0
        %554 = vmatpush1.msra.mxu0 0.0
        %555 = vmatprep.subr.mxu0 0.0
        %556 = vmatpush1.msra.mxu0 0.0
        %557 = vmatprep.subr.mxu0 0.0
        %558 = vmatpush1.msra.mxu0 0.0
        %559 = vmatprep.subr.mxu0 0.0
        %560 = vmatpush1.msra.mxu0 0.0
        %561 = vmatprep.subr.mxu0 0.0
        %562 = vmatpush1.msra.mxu0 0.0
        %563 = vmatprep.subr.mxu0 0.0
        %564 = vmatpush1.msra.mxu0 0.0
        %565 = vmatprep.subr.mxu0 0.0
        %566 = vmatpush1.msra.mxu0 0.0
        %567 = vmatprep.subr.mxu0 0.0
        %568 = vmatpush1.msra.mxu0 0.0
        %569 = vmatprep.subr.mxu0 0.0
        %570 = vmatpush1.msra.mxu0 0.0
        %571 = vmatprep.subr.mxu0 0.0
        %572 = vmatpush1.msra.mxu0 0.0
        %573 = vmatprep.subr.mxu0 0.0
        %574 = vmatpush1.msra.mxu0 0.0
        %575 = vmatprep.subr.mxu0 0.0
        %576 = vmatpush1.msra.mxu0 0.0
        %577 = vmatprep.mubr.f32.mxu0 0.0
        %578 = vmatmul.mubr.f32.gmra.mrb[0].mxu0 %v476
        %v579 = vpop.f32.mrb[0].mxu0
        %v580 = vadd.f32 0.0, %v579
        %v581 = vpop.f32.mrb[0].mxu0
        %v582 = vadd.f32 0.0, %v581
        %583 = vmatprep.mubr.f32.mxu0 0.0
        %584 = vmatmul.mubr.f32.gmra.mrb[0].mxu0 %v477
        %v585 = vpop.f32.mrb[0].mxu0
        %v586 = vadd.f32 0.0, %v585
        %v587 = vpop.f32.mrb[0].mxu0
        %v588 = vadd.f32 0.0, %v587
        %589 = vmatprep.mubr.f32.mxu0 0.0
        %590 = vmatmul.mubr.f32.gmra.mrb[0].mxu0 %v478
        %v591 = vpop.f32.mrb[0].mxu0
        %v592 = vadd.f32 0.0, %v591
        %v593 = vpop.f32.mrb[0].mxu0
        %v594 = vadd.f32 0.0, %v593
        %595 = vmatprep.mubr.f32.mxu0 0.0
        %596 = vmatmul.mubr.f32.gmra.mrb[0].mxu0 %v479
        %v597 = vpop.f32.mrb[0].mxu0
        %v598 = vadd.f32 0.0, %v597
        %v599 = vpop.f32.mrb[0].mxu0
        %v600 = vadd.f32 0.0, %v599
        %601 = vdwg.mxu0
        %v602 = vadd.f32 %v452, %v580
        %v603 = vadd.f32 %v454, %v582
        %v604 = vadd.f32 %v458, %v586
        %v605 = vadd.f32 %v460, %v588
        %v606 = vadd.f32 %v464, %v592
        %v607 = vadd.f32 %v466, %v594
        %v608 = vadd.f32 %v470, %v598
        %v609 = vadd.f32 %v472, %v600
        %v610 = vld [vmem:[%s2] sm:$0x3]
        %v612 = vlaneseq
        %v613 = vshrl.u32 %v612, 7
        %v614 = vsub.s32 0, %v613
        %v615 = vrot.slane %v610, %v614
        %v616 = vlaneseq
        %v617 = vshrl.u32 %v616, 7
        %v618 = vsub.s32 1, %v617
        %v619 = vrot.slane %v610, %v618
        %v622 = vadd.f32 %v602, %v615
        %v623 = vadd.f32 %v603, %v619
        %v624 = vadd.f32 %v604, %v615
        %v625 = vadd.f32 %v605, %v619
        %v626 = vadd.f32 %v606, %v615
        %v627 = vadd.f32 %v607, %v619
        %v628 = vadd.f32 %v608, %v615
        %v629 = vadd.f32 %v609, %v619
        %630 = vst [vmem:[%s217] sm:$0xff] %v622
        %631 = vst [vmem:[%s217 + $0x8] sm:$0xff] %v623
        %632 = vst [vmem:[%s217 + $0x10] sm:$0xff] %v624
        %633 = vst [vmem:[%s217 + $0x18] sm:$0xff] %v625
        %634 = vst [vmem:[%s217 + $0x20] sm:$0xff] %v626
        %635 = vst [vmem:[%s217 + $0x28] sm:$0xff] %v627
        %636 = vst [vmem:[%s217 + $0x30] sm:$0xff] %v628
        %637 = vst [vmem:[%s217 + $0x38] sm:$0xff] %v629
        %s638 = sand.u32 %s111, 1
        %s639 = scalar_lea.sflag [#allocation4], %s638
        %s640 = sand.u32 %s111, 1
        %s641 = smul.addr %s640, 64
        %s642 = scalar_lea.vmem [#allocation7], %s641
        // Predicated region
        $region41: #{tpu_custom_call.1} parent=31 // pred_check
          %p643 = pneg %p121
        $region42: #{tpu_custom_call.1} parent=31 // pred_check_branch
          %645 = sbr.rel (%p643) target = $region44
        $region43: #{tpu_custom_call.1} parent=31 // pred_region
          %s646 = smul.u32 4, %s26
          %s648 = ssub.s32 1024, 1024
          %649 = vsyncadd %s639, %s648
          %s650 = smul.addr %s646, 2
          %s651 = smul.addr %s25, 8
          %s652 = sadd.s32 %s650, %s651
          %s653 = smul.addr %s652, 128
          %s654 = scalar_lea.hbm %s3, %s653
          %s655 = sshll.u32 %s642, 4
          %s656 = int_to_ptr.vmem [resolvable:$true] %s655
          %661 = dma.vmem_to_hbm [thread:$0]  %s656, 1024, %s654, %s639, 256, 256, 16
        $region44: #{tpu_custom_call.1} parent=31 // pred_fallthru
          _
      $region32: #{tpu_custom_call.1} parent=5 // pred_fallthru
        _
      %p662 = scmp.le.s32.totalorder 2, %s16
      // Predicated region
      $region45: #{tpu_custom_call.1} parent=5 // pred_check
        %p663 = pneg %p662
      $region46: #{tpu_custom_call.1} parent=5 // pred_check_branch
        %665 = sbr.rel (%p663) target = $region48
      $region47: #{tpu_custom_call.1} parent=5 // pred_region
        %s666 = ssub.s32 %s16, 2
        // Predicated region
        $region49: #{tpu_custom_call.1} parent=47 // pred_check
          %p667 = pneg %p127
        $region50: #{tpu_custom_call.1} parent=47 // pred_check_branch
          %669 = sbr.rel (%p667) target = $region52
        $region51: #{tpu_custom_call.1} parent=47 // pred_region
          %s670 = sand.u32 %s112, 1
          %s671 = scalar_lea.sflag [#allocation4], %s670
          %s672 = sand.u32 %s112, 1
          %s673 = smul.addr %s672, 64
          %s674 = scalar_lea.vmem [#allocation7], %s673
          %675 = dma.done %s671, 1024
        $region52: #{tpu_custom_call.1} parent=47 // pred_fallthru
          _
      $region48: #{tpu_custom_call.1} parent=5 // pred_fallthru
        _
    $region6: #{tpu_custom_call.1} parent=1 // loop_footer
      %s20 = sadd.s32 1, %s16
    $region7: #{tpu_custom_call.1} parent=1 // loop_footer_branch
      %15 = sbr.rel target = $region3
    $region8: #{tpu_custom_call.1} parent=1 // loop_exit
      _
    %676 = vsyncpa [#allocation3], 1
    %s677 = scalar_lea.sflag [#allocation3], 1
    %678 = vsyncpa %s677, 1
    %679 = vsyncpa [#allocation6], 1
    %680 = vsyncpa [#allocation4], 1
    %s681 = scalar_lea.sflag [#allocation4], 1
    %682 = vsyncpa %s681, 1

// kernel: tpu_custom_call.1
$region0: #{tpu_custom_call.1}
  #allocation0 [shape = 'u32[]', space=smem, size = 0x4, offset = 0x4, fixed_abs, tag = 'smem constant byte address 0x4 - core index']
  #allocation1 [shape = 'u32[144,128]{1,0:T(1,128)}', space=vmem, size = 0x12000, scoped, tag = 'internal scratch']
  %s0 = inlined_call_operand.hbm [shape: f32[2,40,128], index: 0, kind: input, shape index: {}]
  %s1 = inlined_call_operand.hbm [shape: f32[3,128,256], index: 1, kind: input, shape index: {}]
  %s2 = inlined_call_operand.vmem [shape: f32[1,256], index: 2, kind: input, shape index: {}]
  %s3 = inlined_call_operand.hbm [shape: f32[2,32,256], index: 3, kind: output, shape index: {}]
  %s4 = sld [smem:[#allocation0]]
  $region53: #{tpu_custom_call.1} parent=0
    _
  %s6 = ssub.s32 1, %s4
  %s7 = scalar_select 0, %s6, %s4
  $region1: #{tpu_custom_call.1} parent=0
    #allocation2 [shape = 'u8[40960]{0}', space=vmem, size = 0xa000, scoped, tag = 'input window, operand 0']
    #allocation3 [shape = 's32[2]{0}', space=sflag, size = 0x8, scoped, tag = 'scoped memory for tpu_custom_call.1']
    #allocation4 [shape = 's32[2]{0}', space=sflag, size = 0x8, scoped, tag = 'scoped memory for tpu_custom_call.1']
    #allocation5 [shape = 'u8[393216]{0}', space=vmem, size = 0x60000, scoped, tag = 'input window, operand 1, single buffered']
    #allocation6 [shape = 's32[1]{0}', space=sflag, size = 0x4, scoped, tag = 'scoped memory for tpu_custom_call.1']
    #allocation7 [shape = 'u8[65536]{0}', space=vmem, size = 0x10000, scoped, tag = 'output window, operand 0']
    %8 = vsyncpa [#allocation3], 0
    %s9 = scalar_lea.sflag [#allocation3], 1
    %10 = vsyncpa %s9, 0
    %11 = vsyncpa [#allocation6], 0
    %12 = vsyncpa [#allocation4], 0
    %s13 = scalar_lea.sflag [#allocation4], 1
    %14 = vsyncpa %s13, 0
    loop: start=0, step=1, limit=4
    $region2: #{tpu_custom_call.1} parent=1 // loop_pre_header
      _
    $region3: #{tpu_custom_call.1} parent=1 // loop_header
      %s16 = sphi 0, %s20
      %p17 = scmp.ge.s32.totalorder %s16, 4
      %s23 = sphi 0, %s35
      %s24 = sphi 0, %s31
      %s25 = sphi 0, %s23
      %s26 = sphi 0, %s24
      %s27 = sphi 0, %s25
      %s28 = sphi 0, %s26
      %s38 = sphi 0, %s40
      %s41 = sphi 0, %s38
      %s42 = sphi 0, %s41
      %s58 = sphi 0, %s42
      %s62 = sphi 0, %s62
      %s64 = sphi 0, %s62
      %s65 = sphi 0, %s64
      %s79 = sphi 0, %s65
      %s83 = sphi 0, %s83
      %s85 = sphi 0, %s83
      %s86 = sphi 0, %s85
      %s100 = sphi 0, %s86
      %s108 = sphi 0, %s110
      %s111 = sphi 0, %s108
      %s112 = sphi 0, %s111
      %s128 = sphi 0, %s112
    $region4: #{tpu_custom_call.1} parent=1 // loop_header_branch
      %19 = sbr.rel (%p17) target = $region8
    $region5: #{tpu_custom_call.1} parent=1 // loop_body
      %s21 = ssub.s32 %s16, 1
      %s22 = ssub.s32 %s16, 2
      %s29 = sadd.s32 1, %s24
      %p30 = scmp.ge.s32.totalorder %s29, 1
      %s31 = scalar_select %p30, 0, %s29
      %s32 = sadd.s32 1, %s23
      %s33 = scalar_select %p30, %s32, %s23
      %p34 = scmp.ge.s32.totalorder %s33, 2
      %s35 = scalar_select %p34, 0, %s33
      %s36 = ssub.s32 %s23, %s35
      %p37 = scmp.eq.s32.totalorder %s36, 0
      %s39 = sadd.s32 %s38, 1
      %s40 = scalar_select %p37, %s38, %s39
      %p43 = pneg %p37
      %p44 = scmp.eq.s32.totalorder %s16, 1
      %p45 = por %p43, %p44
      %p46 = scmp.ne.s32.totalorder %s38, %s41
      %p47 = scmp.eq.s32.totalorder %s16, 0
      %p48 = por %p46, %p47
      %p49 = scmp.ne.s32.totalorder %s38, %s41
      %p50 = scmp.eq.s32.totalorder %s21, 1
      %p51 = por %p49, %p50
      %p52 = scmp.ne.s32.totalorder %s41, %s42
      %p53 = scmp.eq.s32.totalorder %s21, 0
      %p54 = por %p52, %p53
      %p55 = scmp.ne.s32.totalorder %s41, %s42
      %p56 = scmp.eq.s32.totalorder %s22, 1
      %p57 = por %p55, %p56
      %p59 = scmp.ne.s32.totalorder %s42, %s58
      %p60 = scmp.eq.s32.totalorder %s22, 0
      %p61 = por %p59, %p60
      %s63 = sadd.s32 %s62, 1
      %p66 = scmp.eq.s32.totalorder %s16, 1
      %p67 = scmp.ne.s32.totalorder %s62, %s64
      %p68 = scmp.eq.s32.totalorder %s16, 0
      %p69 = por %p67, %p68
      %p70 = scmp.ne.s32.totalorder %s62, %s64
      %p71 = scmp.eq.s32.totalorder %s21, 1
      %p72 = por %p70, %p71
      %p73 = scmp.ne.s32.totalorder %s64, %s65
      %p74 = scmp.eq.s32.totalorder %s21, 0
      %p75 = por %p73, %p74
      %p76 = scmp.ne.s32.totalorder %s64, %s65
      %p77 = scmp.eq.s32.totalorder %s22, 1
      %p78 = por %p76, %p77
      %p80 = scmp.ne.s32.totalorder %s65, %s79
      %p81 = scmp.eq.s32.totalorder %s22, 0
      %p82 = por %p80, %p81
      %s84 = sadd.s32 %s83, 1
      %p87 = scmp.eq.s32.totalorder %s16, 1
      %p88 = scmp.ne.s32.totalorder %s83, %s85
      %p89 = scmp.eq.s32.totalorder %s16, 0
      %p90 = por %p88, %p89
      %p91 = scmp.ne.s32.totalorder %s83, %s85
      %p92 = scmp.eq.s32.totalorder %s21, 1
      %p93 = por %p91, %p92
      %p94 = scmp.ne.s32.totalorder %s85, %s86
      %p95 = scmp.eq.s32.totalorder %s21, 0
      %p96 = por %p94, %p95
      %p97 = scmp.ne.s32.totalorder %s85, %s86
      %p98 = scmp.eq.s32.totalorder %s22, 1
      %p99 = por %p97, %p98
      %p101 = scmp.ne.s32.totalorder %s86, %s100
      %p102 = scmp.eq.s32.totalorder %s22, 0
      %p103 = por %p101, %p102
      %s104 = ssub.s32 %s23, %s35
      %s105 = ssub.s32 %s24, %s31
      %s106 = sor.u32 %s104, %s105
      %p107 = scmp.eq.s32.totalorder %s106, 0
      %s109 = sadd.s32 %s108, 1
      %s110 = scalar_select %p107, %s108, %s109
      %p113 = pneg %p107
      %p114 = scmp.eq.s32.totalorder %s16, 1
      %p115 = por %p113, %p114
      %p116 = scmp.ne.s32.totalorder %s108, %s111
      %p117 = scmp.eq.s32.totalorder %s16, 0
      %p118 = por %p116, %p117
      %p119 = scmp.ne.s32.totalorder %s108, %s111
      %p120 = scmp.eq.s32.totalorder %s21, 1
      %p121 = por %p119, %p120
      %p122 = scmp.ne.s32.totalorder %s111, %s112
      %p123 = scmp.eq.s32.totalorder %s21, 0
      %p124 = por %p122, %p123
      %p125 = scmp.ne.s32.totalorder %s111, %s112
      %p126 = scmp.eq.s32.totalorder %s22, 1
      %p127 = por %p125, %p126
      %p129 = scmp.ne.s32.totalorder %s112, %s128
      %p130 = scmp.eq.s32.totalorder %s22, 0
      %p131 = por %p129, %p130
      %p132 = scmp.le.s32.totalorder 1, %s16
      %p133 = scmp.lt.s32.totalorder %s16, 3
      %p134 = pnand %p132, %p133
      %p135 = pneg %p134
      // Predicated region
      $region9: #{tpu_custom_call.1} parent=5 // pred_check
        _
      $region10: #{tpu_custom_call.1} parent=5 // pred_check_branch
        %137 = sbr.rel (%p134) target = $region12
      $region11: #{tpu_custom_call.1} parent=5 // pred_region
        %s138 = ssub.s32 %s16, 1
        // Predicated region
        $region13: #{tpu_custom_call.1} parent=11 // pred_check
          %p139 = pneg %p75
        $region14: #{tpu_custom_call.1} parent=11 // pred_check_branch
          %141 = sbr.rel (%p139) target = $region16
        $region15: #{tpu_custom_call.1} parent=11 // pred_region
          %s143 = ssub.s32 12288, 12288
          %144 = vsyncadd [#allocation6], %s143
          %s145 = sshll.u32 [#allocation5], 4
          %s146 = int_to_ptr.vmem [resolvable:$true] %s145
          %151 = dma.hbm_to_vmem [thread:$0]  %s1, 12288, %s146, [#allocation6], 256, 256, 16
        $region16: #{tpu_custom_call.1} parent=11 // pred_fallthru
          _
        // Predicated region
        $region17: #{tpu_custom_call.1} parent=11 // pred_check
          %p152 = pneg %p96
        $region18: #{tpu_custom_call.1} parent=11 // pred_check_branch
          %154 = sbr.rel (%p152) target = $region20
        $region19: #{tpu_custom_call.1} parent=11 // pred_region
          _
        $region20: #{tpu_custom_call.1} parent=11 // pred_fallthru
          _
      $region12: #{tpu_custom_call.1} parent=5 // pred_fallthru
        _
      %p155 = scmp.lt.s32.totalorder %s16, 2
      // Predicated region
      $region21: #{tpu_custom_call.1} parent=5 // pred_check
        %p156 = pneg %p155
      $region22: #{tpu_custom_call.1} parent=5 // pred_check_branch
        %158 = sbr.rel (%p156) target = $region24
      $region23: #{tpu_custom_call.1} parent=5 // pred_region
        // Predicated region
        $region25: #{tpu_custom_call.1} parent=23 // pred_check
          %p159 = pneg %p48
        $region26: #{tpu_custom_call.1} parent=23 // pred_check_branch
          %161 = sbr.rel (%p159) target = $region28
        $region27: #{tpu_custom_call.1} parent=23 // pred_region
          %s162 = sand.u32 %s38, 1
          %s163 = scalar_lea.sflag [#allocation3], %s162
          %s164 = sand.u32 %s38, 1
          %s165 = smul.addr %s164, 40
          %s166 = scalar_lea.vmem [#allocation2], %s165
          %s168 = ssub.s32 640, 640
          %169 = vsyncadd %s163, %s168
          %s170 = smul.addr %s23, 5
          %s171 = smul.addr %s170, 128
          %s172 = scalar_lea.hbm %s0, %s171
          %s173 = sshll.u32 %s166, 4
          %s174 = int_to_ptr.vmem [resolvable:$true] %s173
          %179 = dma.hbm_to_vmem [thread:$0]  %s172, 640, %s174, %s163, 128, 128, 8
        $region28: #{tpu_custom_call.1} parent=23 // pred_fallthru
          _
      $region24: #{tpu_custom_call.1} parent=5 // pred_fallthru
        _
      %p180 = scmp.le.s32.totalorder 1, %s16
      %p181 = scmp.lt.s32.totalorder %s16, 3
      %p182 = pnand %p180, %p181
      %p183 = pneg %p182
      // Predicated region
      $region29: #{tpu_custom_call.1} parent=5 // pred_check
        _
      $region30: #{tpu_custom_call.1} parent=5 // pred_check_branch
        %185 = sbr.rel (%p182) target = $region32
      $region31: #{tpu_custom_call.1} parent=5 // pred_region
        %s186 = ssub.s32 %s16, 1
        %s187 = sand.u32 %s41, 1
        %s188 = scalar_lea.sflag [#allocation3], %s187
        %s189 = sand.u32 %s41, 1
        %s190 = smul.addr %s189, 40
        %s191 = scalar_lea.vmem [#allocation2], %s190
        // Predicated region
        $region33: #{tpu_custom_call.1} parent=31 // pred_check
          %p192 = pneg %p54
        $region34: #{tpu_custom_call.1} parent=31 // pred_check_branch
          %194 = sbr.rel (%p192) target = $region36
        $region35: #{tpu_custom_call.1} parent=31 // pred_region
          %195 = dma.done %s188, 640
        $region36: #{tpu_custom_call.1} parent=31 // pred_fallthru
          _
        // Predicated region
        $region37: #{tpu_custom_call.1} parent=31 // pred_check
          %p196 = pneg %p75
        $region38: #{tpu_custom_call.1} parent=31 // pred_check_branch
          %198 = sbr.rel (%p196) target = $region40
        $region39: #{tpu_custom_call.1} parent=31 // pred_region
          %199 = dma.done [#allocation6], 12288
        $region40: #{tpu_custom_call.1} parent=31 // pred_fallthru
          _
        %s200 = sand.u32 %s41, 1
        %s201 = scalar_lea.sflag [#allocation3], %s200
        %s202 = sand.u32 %s41, 1
        %s203 = smul.addr %s202, 40
        %s204 = scalar_lea.vmem [#allocation2], %s203
        %p205 = pneg %p54
        %p206 = pneg %p51
        %p207 = pneg %p75
        %p208 = pneg %p72
        %p209 = pneg %p96
        %p210 = pneg %p93
        %p211 = pneg %p124
        %p212 = pneg %p121
        %s213 = sand.u32 %s111, 1
        %s214 = scalar_lea.sflag [#allocation4], %s213
        %s215 = sand.u32 %s111, 1
        %s216 = smul.addr %s215, 64
        %s217 = scalar_lea.vmem [#allocation7], %s216
        %s218 = smul.u32 4, %s26
        %s219 = smul.u32 %s26, 32
        %s220 = scalar_lea.vmem %s191, %s219 [#allocation2]
        %v221 = vld [vmem:[%s220] sm:$0xff]
        %v222 = vld [vmem:[%s220 + $0x8] sm:$0xff]
        %v223 = vld [vmem:[%s220 + $0x10] sm:$0xff]
        %v224 = vld [vmem:[%s220 + $0x18] sm:$0xff]
        %v225 = vld [vmem:[#allocation5] sm:$0xff]
        %v226 = vld [vmem:[#allocation5 + $0x8] sm:$0xff]
        %v227 = vld [vmem:[#allocation5 + $0x10] sm:$0xff]
        %v228 = vld [vmem:[#allocation5 + $0x18] sm:$0xff]
        %v229 = vld [vmem:[#allocation5 + $0x20] sm:$0xff]
        %v230 = vld [vmem:[#allocation5 + $0x28] sm:$0xff]
        %v231 = vld [vmem:[#allocation5 + $0x30] sm:$0xff]
        %v232 = vld [vmem:[#allocation5 + $0x38] sm:$0xff]
        %v233 = vld [vmem:[#allocation5 + $0x40] sm:$0xff]
        %v234 = vld [vmem:[#allocation5 + $0x48] sm:$0xff]
        %v235 = vld [vmem:[#allocation5 + $0x50] sm:$0xff]
        %v236 = vld [vmem:[#allocation5 + $0x58] sm:$0xff]
        %v237 = vld [vmem:[#allocation5 + $0x60] sm:$0xff]
        %v238 = vld [vmem:[#allocation5 + $0x68] sm:$0xff]
        %v239 = vld [vmem:[#allocation5 + $0x70] sm:$0xff]
        %v240 = vld [vmem:[#allocation5 + $0x78] sm:$0xff]
        %v241 = vld [vmem:[#allocation5 + $0x80] sm:$0xff]
        %v242 = vld [vmem:[#allocation5 + $0x88] sm:$0xff]
        %v243 = vld [vmem:[#allocation5 + $0x90] sm:$0xff]
        %v244 = vld [vmem:[#allocation5 + $0x98] sm:$0xff]
        %v245 = vld [vmem:[#allocation5 + $0xa0] sm:$0xff]
        %v246 = vld [vmem:[#allocation5 + $0xa8] sm:$0xff]
        %v247 = vld [vmem:[#allocation5 + $0xb0] sm:$0xff]
        %v248 = vld [vmem:[#allocation5 + $0xb8] sm:$0xff]
        %v249 = vld [vmem:[#allocation5 + $0xc0] sm:$0xff]
        %v250 = vld [vmem:[#allocation5 + $0xc8] sm:$0xff]
        %v251 = vld [vmem:[#allocation5 + $0xd0] sm:$0xff]
        %v252 = vld [vmem:[#allocation5 + $0xd8] sm:$0xff]
        %v253 = vld [vmem:[#allocation5 + $0xe0] sm:$0xff]
        %v254 = vld [vmem:[#allocation5 + $0xe8] sm:$0xff]
        %v255 = vld [vmem:[#allocation5 + $0xf0] sm:$0xff]
        %v256 = vld [vmem:[#allocation5 + $0xf8] sm:$0xff]
        %s257 = sadd.s32 %s219, 1
        %s258 = scalar_lea.vmem %s191, %s257 [#allocation2]
        %v259 = vld [vmem:[%s258] sm:$0xff]
        %v260 = vld [vmem:[%s258 + $0x8] sm:$0xff]
        %v261 = vld [vmem:[%s258 + $0x10] sm:$0xff]
        %v262 = vld [vmem:[%s258 + $0x18] sm:$0xff]
        %s263 = scalar_lea.vmem [#allocation5], 256
        %v264 = vld [vmem:[%s263] sm:$0xff]
        %v265 = vld [vmem:[%s263 + $0x8] sm:$0xff]
        %v266 = vld [vmem:[%s263 + $0x10] sm:$0xff]
        %v267 = vld [vmem:[%s263 + $0x18] sm:$0xff]
        %v268 = vld [vmem:[%s263 + $0x20] sm:$0xff]
        %v269 = vld [vmem:[%s263 + $0x28] sm:$0xff]
        %v270 = vld [vmem:[%s263 + $0x30] sm:$0xff]
        %v271 = vld [vmem:[%s263 + $0x38] sm:$0xff]
        %v272 = vld [vmem:[%s263 + $0x40] sm:$0xff]
        %v273 = vld [vmem:[%s263 + $0x48] sm:$0xff]
        %v274 = vld [vmem:[%s263 + $0x50] sm:$0xff]
        %v275 = vld [vmem:[%s263 + $0x58] sm:$0xff]
        %v276 = vld [vmem:[%s263 + $0x60] sm:$0xff]
        %v277 = vld [vmem:[%s263 + $0x68] sm:$0xff]
        %v278 = vld [vmem:[%s263 + $0x70] sm:$0xff]
        %v279 = vld [vmem:[%s263 + $0x78] sm:$0xff]
        %v280 = vld [vmem:[%s263 + $0x80] sm:$0xff]
        %v281 = vld [vmem:[%s263 + $0x88] sm:$0xff]
        %v282 = vld [vmem:[%s263 + $0x90] sm:$0xff]
        %v283 = vld [vmem:[%s263 + $0x98] sm:$0xff]
        %v284 = vld [vmem:[%s263 + $0xa0] sm:$0xff]
        %v285 = vld [vmem:[%s263 + $0xa8] sm:$0xff]
        %v286 = vld [vmem:[%s263 + $0xb0] sm:$0xff]
        %v287 = vld [vmem:[%s263 + $0xb8] sm:$0xff]
        %v288 = vld [vmem:[%s263 + $0xc0] sm:$0xff]
        %v289 = vld [vmem:[%s263 + $0xc8] sm:$0xff]
        %v290 = vld [vmem:[%s263 + $0xd0] sm:$0xff]
        %v291 = vld [vmem:[%s263 + $0xd8] sm:$0xff]
        %v292 = vld [vmem:[%s263 + $0xe0] sm:$0xff]
        %v293 = vld [vmem:[%s263 + $0xe8] sm:$0xff]
        %v294 = vld [vmem:[%s263 + $0xf0] sm:$0xff]
        %v295 = vld [vmem:[%s263 + $0xf8] sm:$0xff]
        %296 = vmatprep.subr.mxu0 %v265
        %297 = vmatpush1.msra.mxu0 %v264
        %298 = vmatprep.subr.mxu0 %v267
        %299 = vmatpush1.msra.mxu0 %v266
        %300 = vmatprep.subr.mxu0 %v269
        %301 = vmatpush1.msra.mxu0 %v268
        %302 = vmatprep.subr.mxu0 %v271
        %303 = vmatpush1.msra.mxu0 %v270
        %304 = vmatprep.subr.mxu0 %v273
        %305 = vmatpush1.msra.mxu0 %v272
        %306 = vmatprep.subr.mxu0 %v275
        %307 = vmatpush1.msra.mxu0 %v274
        %308 = vmatprep.subr.mxu0 %v277
        %309 = vmatpush1.msra.mxu0 %v276
        %310 = vmatprep.subr.mxu0 %v279
        %311 = vmatpush1.msra.mxu0 %v278
        %312 = vmatprep.subr.mxu0 %v281
        %313 = vmatpush1.msra.mxu0 %v280
        %314 = vmatprep.subr.mxu0 %v283
        %315 = vmatpush1.msra.mxu0 %v282
        %316 = vmatprep.subr.mxu0 %v285
        %317 = vmatpush1.msra.mxu0 %v284
        %318 = vmatprep.subr.mxu0 %v287
        %319 = vmatpush1.msra.mxu0 %v286
        %320 = vmatprep.subr.mxu0 %v289
        %321 = vmatpush1.msra.mxu0 %v288
        %322 = vmatprep.subr.mxu0 %v291
        %323 = vmatpush1.msra.mxu0 %v290
        %324 = vmatprep.subr.mxu0 %v293
        %325 = vmatpush1.msra.mxu0 %v292
        %326 = vmatprep.subr.mxu0 %v295
        %327 = vmatpush1.msra.mxu0 %v294
        %328 = vmatprep.subr.mxu0 0.0
        %329 = vmatpush1.msra.mxu0 0.0
        %330 = vmatprep.subr.mxu0 0.0
        %331 = vmatpush1.msra.mxu0 0.0
        %332 = vmatprep.subr.mxu0 0.0
        %333 = vmatpush1.msra.mxu0 0.0
        %334 = vmatprep.subr.mxu0 0.0
        %335 = vmatpush1.msra.mxu0 0.0
        %336 = vmatprep.subr.mxu0 0.0
        %337 = vmatpush1.msra.mxu0 0.0
        %338 = vmatprep.subr.mxu0 0.0
        %339 = vmatpush1.msra.mxu0 0.0
        %340 = vmatprep.subr.mxu0 0.0
        %341 = vmatpush1.msra.mxu0 0.0
        %342 = vmatprep.subr.mxu0 0.0
        %343 = vmatpush1.msra.mxu0 0.0
        %344 = vmatprep.subr.mxu0 0.0
        %345 = vmatpush1.msra.mxu0 0.0
        %346 = vmatprep.subr.mxu0 0.0
        %347 = vmatpush1.msra.mxu0 0.0
        %348 = vmatprep.subr.mxu0 0.0
        %349 = vmatpush1.msra.mxu0 0.0
        %350 = vmatprep.subr.mxu0 0.0
        %351 = vmatpush1.msra.mxu0 0.0
        %352 = vmatprep.subr.mxu0 0.0
        %353 = vmatpush1.msra.mxu0 0.0
        %354 = vmatprep.subr.mxu0 0.0
        %355 = vmatpush1.msra.mxu0 0.0
        %356 = vmatprep.subr.mxu0 0.0
        %357 = vmatpush1.msra.mxu0 0.0
        %358 = vmatprep.subr.mxu0 0.0
        %359 = vmatpush1.msra.mxu0 0.0
        %360 = vmatprep.mubr.f32.mxu0 0.0
        %361 = vmatmul.mubr.f32.gmra.mrb[0].mxu0 %v259
        %v362 = vpop.f32.mrb[0].mxu0
        %v363 = vadd.f32 0.0, %v362
        %v364 = vpop.f32.mrb[0].mxu0
        %v365 = vadd.f32 0.0, %v364
        %366 = vmatprep.mubr.f32.mxu0 0.0
        %367 = vmatmul.mubr.f32.gmra.mrb[0].mxu0 %v260
        %v368 = vpop.f32.mrb[0].mxu0
        %v369 = vadd.f32 0.0, %v368
        %v370 = vpop.f32.mrb[0].mxu0
        %v371 = vadd.f32 0.0, %v370
        %372 = vmatprep.mubr.f32.mxu0 0.0
        %373 = vmatmul.mubr.f32.gmra.mrb[0].mxu0 %v261
        %v374 = vpop.f32.mrb[0].mxu0
        %v375 = vadd.f32 0.0, %v374
        %v376 = vpop.f32.mrb[0].mxu0
        %v377 = vadd.f32 0.0, %v376
        %378 = vmatprep.mubr.f32.mxu0 0.0
        %379 = vmatmul.mubr.f32.gmra.mrb[0].mxu0 %v262
        %v380 = vpop.f32.mrb[0].mxu0
        %v381 = vadd.f32 0.0, %v380
        %v382 = vpop.f32.mrb[0].mxu0
        %v383 = vadd.f32 0.0, %v382
        %384 = vdwg.mxu0
        %385 = vmatprep.subr.mxu0 %v226
        %386 = vmatpush1.msra.mxu0 %v225
        %387 = vmatprep.subr.mxu0 %v228
        %388 = vmatpush1.msra.mxu0 %v227
        %389 = vmatprep.subr.mxu0 %v230
        %390 = vmatpush1.msra.mxu0 %v229
        %391 = vmatprep.subr.mxu0 %v232
        %392 = vmatpush1.msra.mxu0 %v231
        %393 = vmatprep.subr.mxu0 %v234
        %394 = vmatpush1.msra.mxu0 %v233
        %395 = vmatprep.subr.mxu0 %v236
        %396 = vmatpush1.msra.mxu0 %v235
        %397 = vmatprep.subr.mxu0 %v238
        %398 = vmatpush1.msra.mxu0 %v237
        %399 = vmatprep.subr.mxu0 %v240
        %400 = vmatpush1.msra.mxu0 %v239
        %401 = vmatprep.subr.mxu0 %v242
        %402 = vmatpush1.msra.mxu0 %v241
        %403 = vmatprep.subr.mxu0 %v244
        %404 = vmatpush1.msra.mxu0 %v243
        %405 = vmatprep.subr.mxu0 %v246
        %406 = vmatpush1.msra.mxu0 %v245
        %407 = vmatprep.subr.mxu0 %v248
        %408 = vmatpush1.msra.mxu0 %v247
        %409 = vmatprep.subr.mxu0 %v250
        %410 = vmatpush1.msra.mxu0 %v249
        %411 = vmatprep.subr.mxu0 %v252
        %412 = vmatpush1.msra.mxu0 %v251
        %413 = vmatprep.subr.mxu0 %v254
        %414 = vmatpush1.msra.mxu0 %v253
        %415 = vmatprep.subr.mxu0 %v256
        %416 = vmatpush1.msra.mxu0 %v255
        %417 = vmatprep.subr.mxu0 0.0
        %418 = vmatpush1.msra.mxu0 0.0
        %419 = vmatprep.subr.mxu0 0.0
        %420 = vmatpush1.msra.mxu0 0.0
        %421 = vmatprep.subr.mxu0 0.0
        %422 = vmatpush1.msra.mxu0 0.0
        %423 = vmatprep.subr.mxu0 0.0
        %424 = vmatpush1.msra.mxu0 0.0
        %425 = vmatprep.subr.mxu0 0.0
        %426 = vmatpush1.msra.mxu0 0.0
        %427 = vmatprep.subr.mxu0 0.0
        %428 = vmatpush1.msra.mxu0 0.0
        %429 = vmatprep.subr.mxu0 0.0
        %430 = vmatpush1.msra.mxu0 0.0
        %431 = vmatprep.subr.mxu0 0.0
        %432 = vmatpush1.msra.mxu0 0.0
        %433 = vmatprep.subr.mxu0 0.0
        %434 = vmatpush1.msra.mxu0 0.0
        %435 = vmatprep.subr.mxu0 0.0
        %436 = vmatpush1.msra.mxu0 0.0
        %437 = vmatprep.subr.mxu0 0.0
        %438 = vmatpush1.msra.mxu0 0.0
        %439 = vmatprep.subr.mxu0 0.0
        %440 = vmatpush1.msra.mxu0 0.0
        %441 = vmatprep.subr.mxu0 0.0
        %442 = vmatpush1.msra.mxu0 0.0
        %443 = vmatprep.subr.mxu0 0.0
        %444 = vmatpush1.msra.mxu0 0.0
        %445 = vmatprep.subr.mxu0 0.0
        %446 = vmatpush1.msra.mxu0 0.0
        %447 = vmatprep.subr.mxu0 0.0
        %448 = vmatpush1.msra.mxu0 0.0
        %449 = vmatprep.mubr.f32.mxu0 0.0
        %450 = vmatmul.mubr.f32.gmra.mrb[0].mxu0 %v221
        %v451 = vpop.f32.mrb[0].mxu0
        %v452 = vadd.f32 %v363, %v451
        %v453 = vpop.f32.mrb[0].mxu0
        %v454 = vadd.f32 %v365, %v453
        %455 = vmatprep.mubr.f32.mxu0 0.0
        %456 = vmatmul.mubr.f32.gmra.mrb[0].mxu0 %v222
        %v457 = vpop.f32.mrb[0].mxu0
        %v458 = vadd.f32 %v369, %v457
        %v459 = vpop.f32.mrb[0].mxu0
        %v460 = vadd.f32 %v371, %v459
        %461 = vmatprep.mubr.f32.mxu0 0.0
        %462 = vmatmul.mubr.f32.gmra.mrb[0].mxu0 %v223
        %v463 = vpop.f32.mrb[0].mxu0
        %v464 = vadd.f32 %v375, %v463
        %v465 = vpop.f32.mrb[0].mxu0
        %v466 = vadd.f32 %v377, %v465
        %467 = vmatprep.mubr.f32.mxu0 0.0
        %468 = vmatmul.mubr.f32.gmra.mrb[0].mxu0 %v224
        %v469 = vpop.f32.mrb[0].mxu0
        %v470 = vadd.f32 %v381, %v469
        %v471 = vpop.f32.mrb[0].mxu0
        %v472 = vadd.f32 %v383, %v471
        %473 = vdwg.mxu0
        %s474 = sadd.s32 %s219, 2
        %s475 = scalar_lea.vmem %s191, %s474 [#allocation2]
        %v476 = vld [vmem:[%s475] sm:$0xff]
        %v477 = vld [vmem:[%s475 + $0x8] sm:$0xff]
        %v478 = vld [vmem:[%s475 + $0x10] sm:$0xff]
        %v479 = vld [vmem:[%s475 + $0x18] sm:$0xff]
        %s480 = scalar_lea.vmem [#allocation5], 512
        %v481 = vld [vmem:[%s480] sm:$0xff]
        %v482 = vld [vmem:[%s480 + $0x8] sm:$0xff]
        %v483 = vld [vmem:[%s480 + $0x10] sm:$0xff]
        %v484 = vld [vmem:[%s480 + $0x18] sm:$0xff]
        %v485 = vld [vmem:[%s480 + $0x20] sm:$0xff]
        %v486 = vld [vmem:[%s480 + $0x28] sm:$0xff]
        %v487 = vld [vmem:[%s480 + $0x30] sm:$0xff]
        %v488 = vld [vmem:[%s480 + $0x38] sm:$0xff]
        %v489 = vld [vmem:[%s480 + $0x40] sm:$0xff]
        %v490 = vld [vmem:[%s480 + $0x48] sm:$0xff]
        %v491 = vld [vmem:[%s480 + $0x50] sm:$0xff]
        %v492 = vld [vmem:[%s480 + $0x58] sm:$0xff]
        %v493 = vld [vmem:[%s480 + $0x60] sm:$0xff]
        %v494 = vld [vmem:[%s480 + $0x68] sm:$0xff]
        %v495 = vld [vmem:[%s480 + $0x70] sm:$0xff]
        %v496 = vld [vmem:[%s480 + $0x78] sm:$0xff]
        %v497 = vld [vmem:[%s480 + $0x80] sm:$0xff]
        %v498 = vld [vmem:[%s480 + $0x88] sm:$0xff]
        %v499 = vld [vmem:[%s480 + $0x90] sm:$0xff]
        %v500 = vld [vmem:[%s480 + $0x98] sm:$0xff]
        %v501 = vld [vmem:[%s480 + $0xa0] sm:$0xff]
        %v502 = vld [vmem:[%s480 + $0xa8] sm:$0xff]
        %v503 = vld [vmem:[%s480 + $0xb0] sm:$0xff]
        %v504 = vld [vmem:[%s480 + $0xb8] sm:$0xff]
        %v505 = vld [vmem:[%s480 + $0xc0] sm:$0xff]
        %v506 = vld [vmem:[%s480 + $0xc8] sm:$0xff]
        %v507 = vld [vmem:[%s480 + $0xd0] sm:$0xff]
        %v508 = vld [vmem:[%s480 + $0xd8] sm:$0xff]
        %v509 = vld [vmem:[%s480 + $0xe0] sm:$0xff]
        %v510 = vld [vmem:[%s480 + $0xe8] sm:$0xff]
        %v511 = vld [vmem:[%s480 + $0xf0] sm:$0xff]
        %v512 = vld [vmem:[%s480 + $0xf8] sm:$0xff]
        %513 = vmatprep.subr.mxu0 %v482
        %514 = vmatpush1.msra.mxu0 %v481
        %515 = vmatprep.subr.mxu0 %v484
        %516 = vmatpush1.msra.mxu0 %v483
        %517 = vmatprep.subr.mxu0 %v486
        %518 = vmatpush1.msra.mxu0 %v485
        %519 = vmatprep.subr.mxu0 %v488
        %520 = vmatpush1.msra.mxu0 %v487
        %521 = vmatprep.subr.mxu0 %v490
        %522 = vmatpush1.msra.mxu0 %v489
        %523 = vmatprep.subr.mxu0 %v492
        %524 = vmatpush1.msra.mxu0 %v491
        %525 = vmatprep.subr.mxu0 %v494
        %526 = vmatpush1.msra.mxu0 %v493
        %527 = vmatprep.subr.mxu0 %v496
        %528 = vmatpush1.msra.mxu0 %v495
        %529 = vmatprep.subr.mxu0 %v498
        %530 = vmatpush1.msra.mxu0 %v497
        %531 = vmatprep.subr.mxu0 %v500
        %532 = vmatpush1.msra.mxu0 %v499
        %533 = vmatprep.subr.mxu0 %v502
        %534 = vmatpush1.msra.mxu0 %v501
        %535 = vmatprep.subr.mxu0 %v504
        %536 = vmatpush1.msra.mxu0 %v503
        %537 = vmatprep.subr.mxu0 %v506
        %538 = vmatpush1.msra.mxu0 %v505
        %539 = vmatprep.subr.mxu0 %v508
        %540 = vmatpush1.msra.mxu0 %v507
        %541 = vmatprep.subr.mxu0 %v510
        %542 = vmatpush1.msra.mxu0 %v509
        %543 = vmatprep.subr.mxu0 %v512
        %544 = vmatpush1.msra.mxu0 %v511
        %545 = vmatprep.subr.mxu0 0.0
        %546 = vmatpush1.msra.mxu0 0.0
        %547 = vmatprep.subr.mxu0 0.0
        %548 = vmatpush1.msra.mxu0 0.0
        %549 = vmatprep.subr.mxu0 0.0
        %550 = vmatpush1.msra.mxu0 0.0
        %551 = vmatprep.subr.mxu0 0.0
        %552 = vmatpush1.msra.mxu0 0.0
        %553 = vmatprep.subr.mxu0 0.0
        %554 = vmatpush1.msra.mxu0 0.0
        %555 = vmatprep.subr.mxu0 0.0
        %556 = vmatpush1.msra.mxu0 0.0
        %557 = vmatprep.subr.mxu0 0.0
        %558 = vmatpush1.msra.mxu0 0.0
        %559 = vmatprep.subr.mxu0 0.0
        %560 = vmatpush1.msra.mxu0 0.0
        %561 = vmatprep.subr.mxu0 0.0
        %562 = vmatpush1.msra.mxu0 0.0
        %563 = vmatprep.subr.mxu0 0.0
        %564 = vmatpush1.msra.mxu0 0.0
        %565 = vmatprep.subr.mxu0 0.0
        %566 = vmatpush1.msra.mxu0 0.0
        %567 = vmatprep.subr.mxu0 0.0
        %568 = vmatpush1.msra.mxu0 0.0
        %569 = vmatprep.subr.mxu0 0.0
        %570 = vmatpush1.msra.mxu0 0.0
        %571 = vmatprep.subr.mxu0 0.0
        %572 = vmatpush1.msra.mxu0 0.0
        %573 = vmatprep.subr.mxu0 0.0
        %574 = vmatpush1.msra.mxu0 0.0
        %575 = vmatprep.subr.mxu0 0.0
        %576 = vmatpush1.msra.mxu0 0.0
        %577 = vmatprep.mubr.f32.mxu0 0.0
        %578 = vmatmul.mubr.f32.gmra.mrb[0].mxu0 %v476
        %v579 = vpop.f32.mrb[0].mxu0
        %v580 = vadd.f32 0.0, %v579
        %v581 = vpop.f32.mrb[0].mxu0
        %v582 = vadd.f32 0.0, %v581
        %583 = vmatprep.mubr.f32.mxu0 0.0
        %584 = vmatmul.mubr.f32.gmra.mrb[0].mxu0 %v477
        %v585 = vpop.f32.mrb[0].mxu0
        %v586 = vadd.f32 0.0, %v585
        %v587 = vpop.f32.mrb[0].mxu0
        %v588 = vadd.f32 0.0, %v587
        %589 = vmatprep.mubr.f32.mxu0 0.0
        %590 = vmatmul.mubr.f32.gmra.mrb[0].mxu0 %v478
        %v591 = vpop.f32.mrb[0].mxu0
        %v592 = vadd.f32 0.0, %v591
        %v593 = vpop.f32.mrb[0].mxu0
        %v594 = vadd.f32 0.0, %v593
        %595 = vmatprep.mubr.f32.mxu0 0.0
        %596 = vmatmul.mubr.f32.gmra.mrb[0].mxu0 %v479
        %v597 = vpop.f32.mrb[0].mxu0
        %v598 = vadd.f32 0.0, %v597
        %v599 = vpop.f32.mrb[0].mxu0
        %v600 = vadd.f32 0.0, %v599
        %601 = vdwg.mxu0
        %v602 = vadd.f32 %v452, %v580
        %v603 = vadd.f32 %v454, %v582
        %v604 = vadd.f32 %v458, %v586
        %v605 = vadd.f32 %v460, %v588
        %v606 = vadd.f32 %v464, %v592
        %v607 = vadd.f32 %v466, %v594
        %v608 = vadd.f32 %v470, %v598
        %v609 = vadd.f32 %v472, %v600
        %v610 = vld [vmem:[%s2] sm:$0x3]
        %v612 = vlaneseq
        %v613 = vshrl.u32 %v612, 7
        %v614 = vsub.s32 0, %v613
        %v615 = vrot.slane %v610, %v614
        %v616 = vlaneseq
        %v617 = vshrl.u32 %v616, 7
        %v618 = vsub.s32 1, %v617
        %v619 = vrot.slane %v610, %v618
        %v622 = vadd.f32 %v602, %v615
        %v623 = vadd.f32 %v603, %v619
        %v624 = vadd.f32 %v604, %v615
        %v625 = vadd.f32 %v605, %v619
        %v626 = vadd.f32 %v606, %v615
        %v627 = vadd.f32 %v607, %v619
        %v628 = vadd.f32 %v608, %v615
        %v629 = vadd.f32 %v609, %v619
        %630 = vst [vmem:[%s217] sm:$0xff] %v622
        %631 = vst [vmem:[%s217 + $0x8] sm:$0xff] %v623
        %632 = vst [vmem:[%s217 + $0x10] sm:$0xff] %v624
        %633 = vst [vmem:[%s217 + $0x18] sm:$0xff] %v625
        %634 = vst [vmem:[%s217 + $0x20] sm:$0xff] %v626
        %635 = vst [vmem:[%s217 + $0x28] sm:$0xff] %v627
        %636 = vst [vmem:[%s217 + $0x30] sm:$0xff] %v628
        %637 = vst [vmem:[%s217 + $0x38] sm:$0xff] %v629
        %s638 = sand.u32 %s111, 1
        %s639 = scalar_lea.sflag [#allocation4], %s638
        %s640 = sand.u32 %s111, 1
        %s641 = smul.addr %s640, 64
        %s642 = scalar_lea.vmem [#allocation7], %s641
        // Predicated region
        $region41: #{tpu_custom_call.1} parent=31 // pred_check
          %p643 = pneg %p121
        $region42: #{tpu_custom_call.1} parent=31 // pred_check_branch
          %645 = sbr.rel (%p643) target = $region44
        $region43: #{tpu_custom_call.1} parent=31 // pred_region
          %s646 = smul.u32 4, %s26
          %s648 = ssub.s32 1024, 1024
          %649 = vsyncadd %s639, %s648
          %s650 = smul.addr %s646, 2
          %s651 = smul.addr %s25, 8
          %s652 = sadd.s32 %s650, %s651
          %s653 = smul.addr %s652, 128
          %s654 = scalar_lea.hbm %s3, %s653
          %s655 = sshll.u32 %s642, 4
          %s656 = int_to_ptr.vmem [resolvable:$true] %s655
          %661 = dma.vmem_to_hbm [thread:$0]  %s656, 1024, %s654, %s639, 256, 256, 16
        $region44: #{tpu_custom_call.1} parent=31 // pred_fallthru
          _
      $region32: #{tpu_custom_call.1} parent=5 // pred_fallthru
        _
      %p662 = scmp.le.s32.totalorder 2, %s16
      // Predicated region
      $region45: #{tpu_custom_call.1} parent=5 // pred_check
        %p663 = pneg %p662
      $region46: #{tpu_custom_call.1} parent=5 // pred_check_branch
        %665 = sbr.rel (%p663) target = $region48
      $region47: #{tpu_custom_call.1} parent=5 // pred_region
        %s666 = ssub.s32 %s16, 2
        // Predicated region
        $region49: #{tpu_custom_call.1} parent=47 // pred_check
          %p667 = pneg %p127
        $region50: #{tpu_custom_call.1} parent=47 // pred_check_branch
          %669 = sbr.rel (%p667) target = $region52
        $region51: #{tpu_custom_call.1} parent=47 // pred_region
          %s670 = sand.u32 %s112, 1
          %s671 = scalar_lea.sflag [#allocation4], %s670
          %s672 = sand.u32 %s112, 1
          %s673 = smul.addr %s672, 64
          %s674 = scalar_lea.vmem [#allocation7], %s673
          %675 = dma.done %s671, 1024
        $region52: #{tpu_custom_call.1} parent=47 // pred_fallthru
          _
      $region48: #{tpu_custom_call.1} parent=5 // pred_fallthru
        _
    $region6: #{tpu_custom_call.1} parent=1 // loop_footer
      %s20 = sadd.s32 1, %s16
    $region7: #{tpu_custom_call.1} parent=1 // loop_footer_branch
      %15 = sbr.rel target = $region3
    $region8: #{tpu_custom_call.1} parent=1 // loop_exit
      _
    %676 = vsyncpa [#allocation3], 1
    %s677 = scalar_lea.sflag [#allocation3], 1
    %678 = vsyncpa %s677, 1
    %679 = vsyncpa [#allocation6], 1
    %680 = vsyncpa [#allocation4], 1
    %s681 = scalar_lea.sflag [#allocation4], 1
    %682 = vsyncpa %s681, 1

</llo_original>
